<compile_context>
chip_gen: v6e
topology: v6e:2x2x1
jax: 0.10.0
libtpu: 0.0.40
codegen_flags: <defaults>
</compile_context>

<pallas_src>
import jax
import jax.numpy as jnp
from jax import lax
from jax.experimental import pallas as pl
from jax.experimental.pallas import tpu as pltpu


# --------------------------------------------------------------------------
# Pallas kernel: one (batch, q-tile, kv-tile) grid step
# --------------------------------------------------------------------------
def _flash_self_attention_kernel(xq_ref, xkv_ref, wqT_ref, bq_ref, wk_ref,
                                 bk_ref, wv_ref, bv_ref, gamma_ref, o_ref,
                                 q_sc, m_sc, l_sc, acc_sc):
    # xq_ref:  (1, C, tq)  bf16   x columns of this query tile (also residual)
    # xkv_ref: (1, C, tk)  bf16   x columns of this kv tile
    # wqT_ref: (C, C8) bf16   bq_ref: (1, C8) f32
    # wk_ref:  (C8, C) bf16   bk_ref: (C8, 1) f32
    # wv_ref:  (C, C)  bf16   bv_ref: (C, 1)  f32
    # gamma_ref: (1,) f32 in SMEM
    # o_ref:   (1, C, tq) f32
    # scratch: q_sc (tq, C8) f32, m_sc/l_sc (tq, 1) f32, acc_sc (tq, C) f32
    ki = pl.program_id(2)
    nk = pl.num_programs(2)

    @pl.when(ki == 0)
    def _init():
        # Query projection for this q tile, done once and reused for every kv
        # step (the (C,tq)->(tq,C) transpose is amortized over the kv loop).
        xq_t = xq_ref[0].astype(jnp.float32).T.astype(jnp.bfloat16)          # (tq, C)
        q = jnp.dot(xq_t, wqT_ref[...],
                    preferred_element_type=jnp.float32) + bq_ref[...]        # (tq, C8)
        q_sc[...] = q
        m_sc[...] = jnp.full(m_sc.shape, -jnp.inf, dtype=jnp.float32)
        l_sc[...] = jnp.zeros(l_sc.shape, dtype=jnp.float32)
        acc_sc[...] = jnp.zeros(acc_sc.shape, dtype=jnp.float32)

    # K/V projections for this kv tile: channel-major, pixels lane-dense.
    xkv = xkv_ref[0]                                                          # (C, tk) bf16
    k = jnp.dot(wk_ref[...], xkv,
                preferred_element_type=jnp.float32) + bk_ref[...]             # (C8, tk)
    v = jnp.dot(wv_ref[...], xkv,
                preferred_element_type=jnp.float32) + bv_ref[...]             # (C, tk)

    # Energy tile: s[i, j] = sum_c q[i, c] * k[c, j]  (plain NN MXU matmul).
    s = jnp.dot(q_sc[...].astype(jnp.bfloat16), k.astype(jnp.bfloat16),
                preferred_element_type=jnp.float32)                           # (tq, tk)

    # Online softmax over the kv axis; normalization deferred to finalize.
    m_prev = m_sc[...]
    m_new = jnp.maximum(m_prev, jnp.max(s, axis=-1, keepdims=True))           # (tq, 1)
    alpha = jnp.exp(m_prev - m_new)                                           # (tq, 1)
    p = jnp.exp(s - m_new)                                                    # (tq, tk) f32
    l_sc[...] = alpha * l_sc[...] + jnp.sum(p, axis=-1, keepdims=True)
    # acc[i, c] += sum_j p[i, j] * v[c, j]  (bf16 operands, f32 accumulation)
    pv = lax.dot_general(p.astype(jnp.bfloat16), v.astype(jnp.bfloat16),
                         (((1,), (1,)), ((), ())),
                         preferred_element_type=jnp.float32)                  # (tq, C)
    acc_sc[...] = alpha * acc_sc[...] + pv
    m_sc[...] = m_new

    @pl.when(ki == nk - 1)
    def _finalize():
        inv_l = pl.reciprocal(l_sc[...], approx=True)                         # (tq, 1)
        out_t = (acc_sc[...] * inv_l).T                                       # (C, tq)
        o_ref[0] = gamma_ref[0] * out_t + xq_ref[0].astype(jnp.float32)


# --------------------------------------------------------------------------
# Wrapper
# --------------------------------------------------------------------------
def self_attention(x, wq, bq, wk, bk, wv, bv, gamma, *, block_q=None, block_k=None):
    """x: (B, C, H, W). wq/wk: (C//8, C, 1, 1), wv: (C, C, 1, 1), gamma: (1,)."""
    B, C, H, W = x.shape
    HW = H * W
    C8 = wq.shape[0]
    assert HW % 128 == 0, "H*W must be a multiple of 128 (lane tile)"
    # TODO(synk): support H*W not a multiple of 128 via padded/masked tiles.

    def _pick(cands):
        for t in cands:
            if HW % t == 0:
                return t
        return HW

    tq = block_q if block_q is not None else _pick((1024, 512, 256, 128))
    tk = block_k if block_k is not None else _pick((512, 256, 128))
    assert HW % tq == 0 and HW % tk == 0
    nq, nk = HW // tq, HW // tk

    # bf16 MXU operands / halved HBM traffic for x; biases + gamma stay f32.
    xf = x.reshape(B, C, HW).astype(jnp.bfloat16)
    wqT = wq.reshape(C8, C).T.astype(jnp.bfloat16)        # (C, C8)
    bq_row = bq.reshape(1, C8).astype(jnp.float32)
    wk2 = wk.reshape(C8, C).astype(jnp.bfloat16)          # (C8, C)
    bk_col = bk.reshape(C8, 1).astype(jnp.float32)
    wv2 = wv.reshape(C, C).astype(jnp.bfloat16)           # (C, C)
    bv_col = bv.reshape(C, 1).astype(jnp.float32)
    g = gamma.reshape(1).astype(jnp.float32)

    # Explicit scoped-VMEM budget sized from the actual tiles (with headroom),
    # clamped so it never exceeds v7x's 64 MiB physical VMEM.
    bf16b, f32b = 2, 4
    vmem_est = (
        2 * (C * tq + C * tk) * bf16b             # double-buffered x blocks
        + 2 * C * tq * f32b                       # double-buffered output block
        + (tq * C8 + 2 * tq + tq * C) * f32b      # scratch: q, m, l, acc
        + 3 * tq * tk * f32b                      # s, p (+ bf16 copy headroom)
        + (C8 + C) * tk * f32b                    # k, v projections
        + 2 * ((2 * C8 + C) * C * bf16b + (2 * C8 + C) * f32b)  # weights+biases
    )
    vmem_limit = int(min(max(2 * vmem_est, 32 * 1024 * 1024), 56 * 1024 * 1024))

    flops = 2 * B * ((2 * C8 + C) * C * HW + C8 * HW * HW + C * HW * HW)
    bytes_accessed = (2 * B * C * HW * (1 + nq) + 4 * B * C * HW
                      + 2 * (2 * C8 * C + C * C) + 4 * (2 * C8 + C + 1))
    cost = pl.CostEstimate(flops=flops, transcendentals=B * HW * HW,
                           bytes_accessed=bytes_accessed)

    out = pl.pallas_call(
        _flash_self_attention_kernel,
        out_shape=jax.ShapeDtypeStruct((B, C, HW), jnp.float32),
        grid=(B, nq, nk),
        in_specs=[
            pl.BlockSpec((1, C, tq), lambda b, qi, ki: (b, 0, qi)),   # x (q tile / residual)
            pl.BlockSpec((1, C, tk), lambda b, qi, ki: (b, 0, ki)),   # x (kv tile)
            pl.BlockSpec((C, C8), lambda b, qi, ki: (0, 0)),          # WqT (VMEM-resident)
            pl.BlockSpec((1, C8), lambda b, qi, ki: (0, 0)),          # bq
            pl.BlockSpec((C8, C), lambda b, qi, ki: (0, 0)),          # Wk
            pl.BlockSpec((C8, 1), lambda b, qi, ki: (0, 0)),          # bk
            pl.BlockSpec((C, C), lambda b, qi, ki: (0, 0)),           # Wv
            pl.BlockSpec((C, 1), lambda b, qi, ki: (0, 0)),           # bv
            pl.BlockSpec(memory_space=pltpu.MemorySpace.SMEM),        # gamma scalar
        ],
        out_specs=pl.BlockSpec((1, C, tq), lambda b, qi, ki: (b, 0, qi)),
        scratch_shapes=[
            pltpu.VMEM((tq, C8), jnp.float32),   # q tile (query-major)
            pltpu.VMEM((tq, 1), jnp.float32),    # running max m
            pltpu.VMEM((tq, 1), jnp.float32),    # running denominator l
            pltpu.VMEM((tq, C), jnp.float32),    # running (unnormalized) output
        ],
        compiler_params=pltpu.CompilerParams(
            dimension_semantics=("parallel", "parallel", "arbitrary"),
            vmem_limit_bytes=vmem_limit),
        cost_estimate=cost,
    )(xf, xf, wqT, bq_row, wk2, bk_col, wv2, bv_col, g)

    return out.reshape(B, C, H, W)


# --------------------------------------------------------------------------
# Pure-JAX reference (f32, HIGHEST precision) for the correctness check
# --------------------------------------------------------------------------
def ref_forward(x, wq2, bq, wk2, bk, wv2, bv, gamma):
    B, C, H, W = x.shape
    HW = H * W
    xf = x.reshape(B, C, HW)
    hp = jax.lax.Precision.HIGHEST
    q = jnp.einsum("oc,bcn->bno", wq2, xf, precision=hp) + bq[None, None, :]  # (B, HW, C8)
    k = jnp.einsum("oc,bcn->bon", wk2, xf, precision=hp) + bk[None, :, None]  # (B, C8, HW)
    v = jnp.einsum("oc,bcn->bon", wv2, xf, precision=hp) + bv[None, :, None]  # (B, C, HW)
    energy = jnp.einsum("bic,bcj->bij", q, k, precision=hp)                   # (B, HW, HW)
    attn = jax.nn.softmax(energy, axis=-1)
    out = jnp.einsum("bcj,bij->bci", v, attn, precision=hp)                   # (B, C, HW)
    out = gamma[0] * out + xf
    return out.reshape(B, C, H, W)


# --------------------------------------------------------------------------
if __name__ == "__main__":
    # in_dim must be >= 8 for the module's in_dim // 8 query/key channels.
    B, C, H, W = 2, 32, 16, 16          # HW = 256, C8 = 4
    C8 = C // 8

    key = jax.random.PRNGKey(0)
    ks = jax.random.split(key, 7)
    x = jax.random.normal(ks[0], (B, C, H, W), jnp.float32)

    wq = jax.random.normal(ks[1], (C8, C, 1, 1), jnp.float32) * 0.1
    bq = jax.random.normal(ks[2], (C8,), jnp.float32) * 0.1
    wk = jax.random.normal(ks[3], (C8, C, 1, 1), jnp.float32) * 0.1
    bk = jax.random.normal(ks[4], (C8,), jnp.float32) * 0.1
    wv = jax.random.normal(ks[5], (C, C, 1, 1), jnp.float32) * 0.1
    bv = jax.random.normal(ks[6], (C,), jnp.float32) * 0.1
    # PyTorch initializes gamma ~ N(0, 0.02); use a larger magnitude so the
    # attention branch actually contributes to the numerical check.
    gamma = jnp.array([0.5], jnp.float32)

    # block_q = block_k = 128 -> grid (2, 2, 2): exercises multi-q-tile init
    # and the multi-step online-softmax accumulation path.
    out = self_attention(x, wq, bq, wk, bk, wv, bv, gamma, block_q=128, block_k=128)
    out = jax.block_until_ready(out)

    ref = ref_forward(x, wq.reshape(C8, C), bq, wk.reshape(C8, C), bk,
                      wv.reshape(C, C), bv, gamma)
    assert out.shape == (B, C, H, W)
    max_err = float(jnp.max(jnp.abs(out - ref)))
    # Tolerance sized for bf16 MXU operands + approx reciprocal vs f32 HIGHEST ref.
    assert jnp.allclose(out, ref, rtol=1e-2, atol=1e-2), f"max_err={max_err}"

    print("KERNEL_OK")
</pallas_src>

<mosaic_0001>
module attributes {stable_mosaic.version = 11 : i64} {
  func.func @_flash_self_attention_kernel(%arg0: i32, %arg1: i32, %arg2: i32, %arg3: memref<1x32x128xbf16, #tpu.memory_space<vmem>>, %arg4: memref<1x32x128xbf16, #tpu.memory_space<vmem>>, %arg5: memref<32x4xbf16, #tpu.memory_space<vmem>>, %arg6: memref<1x4xf32, #tpu.memory_space<vmem>>, %arg7: memref<4x32xbf16, #tpu.memory_space<vmem>>, %arg8: memref<4x1xf32, #tpu.memory_space<vmem>>, %arg9: memref<32x32xbf16, #tpu.memory_space<vmem>>, %arg10: memref<32x1xf32, #tpu.memory_space<vmem>>, %arg11: memref<1xf32, #tpu.memory_space<smem>>, %arg12: memref<1x32x128xf32, #tpu.memory_space<vmem>>, %arg13: memref<128x4xf32, #tpu.memory_space<vmem>>, %arg14: memref<128x1xf32, #tpu.memory_space<vmem>>, %arg15: memref<128x1xf32, #tpu.memory_space<vmem>>, %arg16: memref<128x32xf32, #tpu.memory_space<vmem>>) attributes {dimension_semantics = [#tpu.dimension_semantics<parallel>, #tpu.dimension_semantics<parallel>, #tpu.dimension_semantics<arbitrary>], iteration_bounds = array<i64: 2, 2, 2>, scalar_prefetch = 0 : i64, scratch_operands = 4 : i64, tpu.core_type = #tpu.core_type<tc>, window_params = [{transform_indices = @transform_0, window_bounds = array<i64: 1, 32, 128>}, {transform_indices = @transform_1, window_bounds = array<i64: 1, 32, 128>}, {pipeline_mode = #tpu.pipeline_mode<synchronous>, transform_indices = @transform_2, window_bounds = array<i64: 32, 4>}, {pipeline_mode = #tpu.pipeline_mode<synchronous>, transform_indices = @transform_3, window_bounds = array<i64: 1, 4>}, {pipeline_mode = #tpu.pipeline_mode<synchronous>, transform_indices = @transform_4, window_bounds = array<i64: 4, 32>}, {pipeline_mode = #tpu.pipeline_mode<synchronous>, transform_indices = @transform_5, window_bounds = array<i64: 4, 1>}, {pipeline_mode = #tpu.pipeline_mode<synchronous>, transform_indices = @transform_6, window_bounds = array<i64: 32, 32>}, {pipeline_mode = #tpu.pipeline_mode<synchronous>, transform_indices = @transform_7, window_bounds = array<i64: 32, 1>}, {transform_indices = @transform_8, window_bounds = array<i64: 1>}, {transform_indices = @transform_9, window_bounds = array<i64: 1, 32, 128>}]} {
    %c0_i32 = arith.constant 0 : i32
    %0 = arith.cmpi eq, %arg2, %c0_i32 : i32
    %1 = arith.extui %0 : i1 to i32
    %c0_i32_0 = arith.constant 0 : i32
    %2 = arith.cmpi ne, %1, %c0_i32_0 : i32
    scf.if %2 {
      %c0_31 = arith.constant 0 : index
      %c0_32 = arith.constant 0 : index
      %c0_33 = arith.constant 0 : index
      %46 = vector.load %arg3[%c0_31, %c0_32, %c0_33] : memref<1x32x128xbf16, #tpu.memory_space<vmem>>, vector<1x32x128xbf16>
      %47 = vector.shape_cast %46 : vector<1x32x128xbf16> to vector<32x128xbf16>
      %48 = arith.extf %47 : vector<32x128xbf16> to vector<32x128xf32>
      %49 = tpu.transpose %48, [1, 0] : vector<32x128xf32> -> vector<128x32xf32>
      %50 = arith.truncf %49 : vector<128x32xf32> to vector<128x32xbf16>
      %c0_34 = arith.constant 0 : index
      %c0_35 = arith.constant 0 : index
      %51 = vector.load %arg5[%c0_34, %c0_35] : memref<32x4xbf16, #tpu.memory_space<vmem>>, vector<32x4xbf16>
      %cst_36 = arith.constant dense<0.000000e+00> : vector<128x4xf32>
      %52 = tpu.matmul %50, %51, %cst_36 {dimension_numbers = #tpu.dot_dimension_numbers<[1], [0], [0], [1], [0, 0, 1, 1], [], []>} : vector<128x32xbf16>, vector<32x4xbf16>, vector<128x4xf32> -> vector<128x4xf32>
      %c0_37 = arith.constant 0 : index
      %c0_38 = arith.constant 0 : index
      %53 = vector.load %arg6[%c0_37, %c0_38] : memref<1x4xf32, #tpu.memory_space<vmem>>, vector<1x4xf32>
      %54 = vector.broadcast %53 : vector<1x4xf32> to vector<128x4xf32>
      %55 = arith.addf %52, %54 : vector<128x4xf32>
      %c0_39 = arith.constant 0 : index
      %c0_40 = arith.constant 0 : index
      %56 = vector.load %arg13[%c0_39, %c0_40] : memref<128x4xf32, #tpu.memory_space<vmem>>, vector<128x4xf32>
      tpu.vector_store %arg13[%c0_39, %c0_40], %55 {strides = array<i32>} : memref<128x4xf32, #tpu.memory_space<vmem>>, vector<128x4xf32>,
      %cst_41 = arith.constant 0xFF800000 : f32
      %57 = vector.broadcast %cst_41 : f32 to vector<128x1xf32>
      %c0_42 = arith.constant 0 : index
      %c0_43 = arith.constant 0 : index
      %58 = vector.load %arg14[%c0_42, %c0_43] : memref<128x1xf32, #tpu.memory_space<vmem>>, vector<128x1xf32>
      tpu.vector_store %arg14[%c0_42, %c0_43], %57 {strides = array<i32>} : memref<128x1xf32, #tpu.memory_space<vmem>>, vector<128x1xf32>,
      %cst_44 = arith.constant 0.000000e+00 : f32
      %59 = vector.broadcast %cst_44 : f32 to vector<128x1xf32>
      %c0_45 = arith.constant 0 : index
      %c0_46 = arith.constant 0 : index
      %60 = vector.load %arg15[%c0_45, %c0_46] : memref<128x1xf32, #tpu.memory_space<vmem>>, vector<128x1xf32>
      tpu.vector_store %arg15[%c0_45, %c0_46], %59 {strides = array<i32>} : memref<128x1xf32, #tpu.memory_space<vmem>>, vector<128x1xf32>,
      %cst_47 = arith.constant 0.000000e+00 : f32
      %61 = vector.broadcast %cst_47 : f32 to vector<128x32xf32>
      %c0_48 = arith.constant 0 : index
      %c0_49 = arith.constant 0 : index
      %62 = vector.load %arg16[%c0_48, %c0_49] : memref<128x32xf32, #tpu.memory_space<vmem>>, vector<128x32xf32>
      tpu.vector_store %arg16[%c0_48, %c0_49], %61 {strides = array<i32>} : memref<128x32xf32, #tpu.memory_space<vmem>>, vector<128x32xf32>,
    } else {
    }
    %c0 = arith.constant 0 : index
    %c0_1 = arith.constant 0 : index
    %c0_2 = arith.constant 0 : index
    %3 = vector.load %arg4[%c0, %c0_1, %c0_2] : memref<1x32x128xbf16, #tpu.memory_space<vmem>>, vector<1x32x128xbf16>
    %4 = vector.shape_cast %3 : vector<1x32x128xbf16> to vector<32x128xbf16>
    %c0_3 = arith.constant 0 : index
    %c0_4 = arith.constant 0 : index
    %5 = vector.load %arg7[%c0_3, %c0_4] : memref<4x32xbf16, #tpu.memory_space<vmem>>, vector<4x32xbf16>
    %cst = arith.constant dense<0.000000e+00> : vector<4x128xf32>
    %6 = tpu.matmul %5, %4, %cst {dimension_numbers = #tpu.dot_dimension_numbers<[1], [0], [0], [1], [0, 0, 1, 1], [], []>} : vector<4x32xbf16>, vector<32x128xbf16>, vector<4x128xf32> -> vector<4x128xf32>
    %c0_5 = arith.constant 0 : index
    %c0_6 = arith.constant 0 : index
    %7 = vector.load %arg8[%c0_5, %c0_6] : memref<4x1xf32, #tpu.memory_space<vmem>>, vector<4x1xf32>
    %8 = vector.broadcast %7 : vector<4x1xf32> to vector<4x128xf32>
    %9 = arith.addf %6, %8 : vector<4x128xf32>
    %c0_7 = arith.constant 0 : index
    %c0_8 = arith.constant 0 : index
    %10 = vector.load %arg9[%c0_7, %c0_8] : memref<32x32xbf16, #tpu.memory_space<vmem>>, vector<32x32xbf16>
    %cst_9 = arith.constant dense<0.000000e+00> : vector<32x128xf32>
    %11 = tpu.matmul %10, %4, %cst_9 {dimension_numbers = #tpu.dot_dimension_numbers<[1], [0], [0], [1], [0, 0, 1, 1], [], []>} : vector<32x32xbf16>, vector<32x128xbf16>, vector<32x128xf32> -> vector<32x128xf32>
    %c0_10 = arith.constant 0 : index
    %c0_11 = arith.constant 0 : index
    %12 = vector.load %arg10[%c0_10, %c0_11] : memref<32x1xf32, #tpu.memory_space<vmem>>, vector<32x1xf32>
    %13 = vector.broadcast %12 : vector<32x1xf32> to vector<32x128xf32>
    %14 = arith.addf %11, %13 : vector<32x128xf32>
    %c0_12 = arith.constant 0 : index
    %c0_13 = arith.constant 0 : index
    %15 = vector.load %arg13[%c0_12, %c0_13] : memref<128x4xf32, #tpu.memory_space<vmem>>, vector<128x4xf32>
    %16 = arith.truncf %15 : vector<128x4xf32> to vector<128x4xbf16>
    %17 = arith.truncf %9 : vector<4x128xf32> to vector<4x128xbf16>
    %cst_14 = arith.constant dense<0.000000e+00> : vector<128x128xf32>
    %18 = tpu.matmul %16, %17, %cst_14 {dimension_numbers = #tpu.dot_dimension_numbers<[1], [0], [0], [1], [0, 0, 1, 1], [], []>} : vector<128x4xbf16>, vector<4x128xbf16>, vector<128x128xf32> -> vector<128x128xf32>
    %c0_15 = arith.constant 0 : index
    %c0_16 = arith.constant 0 : index
    %19 = vector.load %arg14[%c0_15, %c0_16] : memref<128x1xf32, #tpu.memory_space<vmem>>, vector<128x1xf32>
    %cst_17 = arith.constant dense<0xFF800000> : vector<128xf32>
    %20 = vector.multi_reduction <maximumf>, %18, %cst_17 [1] : vector<128x128xf32> to vector<128xf32>
    %21 = vector.shape_cast %20 : vector<128xf32> to vector<128x1xf32>
    %22 = arith.maximumf %19, %21 : vector<128x1xf32>
    %23 = arith.subf %19, %22 : vector<128x1xf32>
    %24 = math.exp %23 : vector<128x1xf32>
    %25 = vector.broadcast %22 : vector<128x1xf32> to vector<128x128xf32>
    %26 = arith.subf %18, %25 : vector<128x128xf32>
    %27 = math.exp %26 : vector<128x128xf32>
    %c0_18 = arith.constant 0 : index
    %c0_19 = arith.constant 0 : index
    %28 = vector.load %arg15[%c0_18, %c0_19] : memref<128x1xf32, #tpu.memory_space<vmem>>, vector<128x1xf32>
    %29 = arith.mulf %24, %28 : vector<128x1xf32>
    %cst_20 = arith.constant dense<0.000000e+00> : vector<128xf32>
    %30 = vector.multi_reduction <add>, %27, %cst_20 [1] : vector<128x128xf32> to vector<128xf32>
    %31 = vector.shape_cast %30 : vector<128xf32> to vector<128x1xf32>
    %32 = arith.addf %29, %31 : vector<128x1xf32>
    %c0_21 = arith.constant 0 : index
    %c0_22 = arith.constant 0 : index
    %33 = vector.load %arg15[%c0_21, %c0_22] : memref<128x1xf32, #tpu.memory_space<vmem>>, vector<128x1xf32>
    tpu.vector_store %arg15[%c0_21, %c0_22], %32 {strides = array<i32>} : memref<128x1xf32, #tpu.memory_space<vmem>>, vector<128x1xf32>,
    %34 = arith.truncf %27 : vector<128x128xf32> to vector<128x128xbf16>
    %35 = arith.truncf %14 : vector<32x128xf32> to vector<32x128xbf16>
    %cst_23 = arith.constant dense<0.000000e+00> : vector<128x32xf32>
    %36 = tpu.matmul %34, %35, %cst_23 {dimension_numbers = #tpu.dot_dimension_numbers<[1], [1], [0], [0], [0, 0, 1, 0], [], []>} : vector<128x128xbf16>, vector<32x128xbf16>, vector<128x32xf32> -> vector<128x32xf32>
    %c0_24 = arith.constant 0 : index
    %c0_25 = arith.constant 0 : index
    %37 = vector.load %arg16[%c0_24, %c0_25] : memref<128x32xf32, #tpu.memory_space<vmem>>, vector<128x32xf32>
    %38 = vector.broadcast %24 : vector<128x1xf32> to vector<128x32xf32>
    %39 = arith.mulf %38, %37 : vector<128x32xf32>
    %40 = arith.addf %39, %36 : vector<128x32xf32>
    %c0_26 = arith.constant 0 : index
    %c0_27 = arith.constant 0 : index
    %41 = vector.load %arg16[%c0_26, %c0_27] : memref<128x32xf32, #tpu.memory_space<vmem>>, vector<128x32xf32>
    tpu.vector_store %arg16[%c0_26, %c0_27], %40 {strides = array<i32>} : memref<128x32xf32, #tpu.memory_space<vmem>>, vector<128x32xf32>,
    %c0_28 = arith.constant 0 : index
    %c0_29 = arith.constant 0 : index
    %42 = vector.load %arg14[%c0_28, %c0_29] : memref<128x1xf32, #tpu.memory_space<vmem>>, vector<128x1xf32>
    tpu.vector_store %arg14[%c0_28, %c0_29], %22 {strides = array<i32>} : memref<128x1xf32, #tpu.memory_space<vmem>>, vector<128x1xf32>,
    %c1_i32 = arith.constant 1 : i32
    %43 = arith.cmpi eq, %arg2, %c1_i32 : i32
    %44 = arith.extui %43 : i1 to i32
    %c0_i32_30 = arith.constant 0 : i32
    %45 = arith.cmpi ne, %44, %c0_i32_30 : i32
    scf.if %45 {
      %c0_31 = arith.constant 0 : index
      %c0_32 = arith.constant 0 : index
      %46 = vector.load %arg15[%c0_31, %c0_32] : memref<128x1xf32, #tpu.memory_space<vmem>>, vector<128x1xf32>
      %47 = tpu.reciprocal %46 {approx = true} : vector<128x1xf32> -> vector<128x1xf32>
      %c0_33 = arith.constant 0 : index
      %c0_34 = arith.constant 0 : index
      %48 = vector.load %arg16[%c0_33, %c0_34] : memref<128x32xf32, #tpu.memory_space<vmem>>, vector<128x32xf32>
      %49 = vector.broadcast %47 : vector<128x1xf32> to vector<128x32xf32>
      %50 = arith.mulf %48, %49 : vector<128x32xf32>
      %51 = tpu.transpose %50, [1, 0] : vector<128x32xf32> -> vector<32x128xf32>
      %c0_35 = arith.constant 0 : index
      %52 = memref.load %arg11[%c0_35] : memref<1xf32, #tpu.memory_space<smem>>
      %53 = vector.broadcast %52 : f32 to vector<32x128xf32>
      %54 = arith.mulf %53, %51 : vector<32x128xf32>
      %c0_36 = arith.constant 0 : index
      %c0_37 = arith.constant 0 : index
      %c0_38 = arith.constant 0 : index
      %55 = vector.load %arg3[%c0_36, %c0_37, %c0_38] : memref<1x32x128xbf16, #tpu.memory_space<vmem>>, vector<1x32x128xbf16>
      %56 = vector.shape_cast %55 : vector<1x32x128xbf16> to vector<32x128xbf16>
      %57 = arith.extf %56 : vector<32x128xbf16> to vector<32x128xf32>
      %58 = arith.addf %54, %57 : vector<32x128xf32>
      %c0_39 = arith.constant 0 : index
      %c0_40 = arith.constant 0 : index
      %c0_41 = arith.constant 0 : index
      %59 = vector.load %arg12[%c0_39, %c0_40, %c0_41] : memref<1x32x128xf32, #tpu.memory_space<vmem>>, vector<1x32x128xf32>
      %60 = vector.shape_cast %59 : vector<1x32x128xf32> to vector<32x128xf32>
      %61 = vector.shape_cast %58 : vector<32x128xf32> to vector<1x32x128xf32>
      tpu.vector_store %arg12[%c0_39, %c0_40, %c0_41], %61 {strides = array<i32>} : memref<1x32x128xf32, #tpu.memory_space<vmem>>, vector<1x32x128xf32>,
    } else {
    }
    return
  }
  func.func @transform_0(%arg0: i32, %arg1: i32, %arg2: i32) -> (i32, i32, i32) {
    %c0_i32 = arith.constant 0 : i32
    %c0_i32_0 = arith.constant 0 : i32
    return %arg0, %c0_i32, %arg1 : i32, i32, i32
  }
  func.func @transform_1(%arg0: i32, %arg1: i32, %arg2: i32) -> (i32, i32, i32) {
    %c0_i32 = arith.constant 0 : i32
    %c0_i32_0 = arith.constant 0 : i32
    return %arg0, %c0_i32, %arg2 : i32, i32, i32
  }
  func.func @transform_2(%arg0: i32, %arg1: i32, %arg2: i32) -> (i32, i32) {
    %c0_i32 = arith.constant 0 : i32
    %c0_i32_0 = arith.constant 0 : i32
    %c0_i32_1 = arith.constant 0 : i32
    return %c0_i32, %c0_i32_0 : i32, i32
  }
  func.func @transform_3(%arg0: i32, %arg1: i32, %arg2: i32) -> (i32, i32) {
    %c0_i32 = arith.constant 0 : i32
    %c0_i32_0 = arith.constant 0 : i32
    %c0_i32_1 = arith.constant 0 : i32
    return %c0_i32, %c0_i32_0 : i32, i32
  }
  func.func @transform_4(%arg0: i32, %arg1: i32, %arg2: i32) -> (i32, i32) {
    %c0_i32 = arith.constant 0 : i32
    %c0_i32_0 = arith.constant 0 : i32
    %c0_i32_1 = arith.constant 0 : i32
    return %c0_i32, %c0_i32_0 : i32, i32
  }
  func.func @transform_5(%arg0: i32, %arg1: i32, %arg2: i32) -> (i32, i32) {
    %c0_i32 = arith.constant 0 : i32
    %c0_i32_0 = arith.constant 0 : i32
    %c0_i32_1 = arith.constant 0 : i32
    return %c0_i32, %c0_i32_0 : i32, i32
  }
  func.func @transform_6(%arg0: i32, %arg1: i32, %arg2: i32) -> (i32, i32) {
    %c0_i32 = arith.constant 0 : i32
    %c0_i32_0 = arith.constant 0 : i32
    %c0_i32_1 = arith.constant 0 : i32
    return %c0_i32, %c0_i32_0 : i32, i32
  }
  func.func @transform_7(%arg0: i32, %arg1: i32, %arg2: i32) -> (i32, i32) {
    %c0_i32 = arith.constant 0 : i32
    %c0_i32_0 = arith.constant 0 : i32
    %c0_i32_1 = arith.constant 0 : i32
    return %c0_i32, %c0_i32_0 : i32, i32
  }
  func.func @transform_8(%arg0: i32, %arg1: i32, %arg2: i32) -> i32 {
    %c0_i32 = arith.constant 0 : i32
    %c0_i32_0 = arith.constant 0 : i32
    return %c0_i32 : i32
  }
  func.func @transform_9(%arg0: i32, %arg1: i32, %arg2: i32) -> (i32, i32, i32) {
    %c0_i32 = arith.constant 0 : i32
    %c0_i32_0 = arith.constant 0 : i32
    return %arg0, %c0_i32, %arg1 : i32, i32, i32
  }
}

</mosaic_0001>

<llo_original>
// kernel: tpu_custom_call.1
$region0: #{tpu_custom_call.1}
  #allocation0 [shape = 'u32[]', space=smem, size = 0x4, offset = 0x4, fixed_abs, tag = 'smem constant byte address 0x4 - core index']
  #allocation1 [shape = 'u32[144,128]{1,0:T(1,128)}', space=vmem, size = 0x12000, scoped, tag = 'internal scratch']
  #allocation2 [shape = 'f32[128,4]{1,0:T(8,128)}', space=vmem, size = 0x10000, scoped, tag = 'scratch operand']
  #allocation3 [shape = 'f32[128,1]{1,0:T(8,128)}', space=vmem, size = 0x10000, scoped, tag = 'scratch operand']
  #allocation4 [shape = 'f32[128,1]{1,0:T(8,128)}', space=vmem, size = 0x10000, scoped, tag = 'scratch operand']
  #allocation5 [shape = 'f32[128,32]{1,0:T(8,128)}', space=vmem, size = 0x10000, scoped, tag = 'scratch operand']
  #allocation6 [shape = 'f32[1]{0:T(128)S(6)}', space=smem, size = 0x200, scoped, tag = 'scoped memory for tpu_custom_call.1']
  %s0 = inlined_call_operand.hbm [shape: bf16[2,32,256], index: 0, kind: input, shape index: {}]
  %s1 = inlined_call_operand.hbm [shape: bf16[2,32,256], index: 1, kind: input, shape index: {}]
  %s2 = inlined_call_operand.vmem [shape: bf16[32,4], index: 2, kind: input, shape index: {}]
  %s3 = inlined_call_operand.vmem [shape: f32[1,4], index: 3, kind: input, shape index: {}]
  %s4 = inlined_call_operand.vmem [shape: bf16[4,32], index: 4, kind: input, shape index: {}]
  %s5 = inlined_call_operand.vmem [shape: f32[4,1], index: 5, kind: input, shape index: {}]
  %s6 = inlined_call_operand.vmem [shape: bf16[32,32], index: 6, kind: input, shape index: {}]
  %s7 = inlined_call_operand.vmem [shape: f32[32,1], index: 7, kind: input, shape index: {}]
  %s8 = inlined_call_operand.<no memory space> [shape: f32[1], index: 8, kind: input, shape index: {}]
  %s9 = inlined_call_operand.hbm [shape: f32[2,32,256], index: 9, kind: output, shape index: {}]
  %s10 = sld [smem:[#allocation0]]
  $region85: #{tpu_custom_call.1} parent=0
    _
  %s12 = ssub.s32 1, %s10
  %s13 = scalar_select 0, %s12, %s10
  %14 = sst [smem:[#allocation6]] %s8
  $region1: #{tpu_custom_call.1} parent=0
    #allocation7 [shape = 'u8[16384]{0}', space=vmem, size = 0x4000, scoped, tag = 'input window, operand 0']
    #allocation8 [shape = 's32[2]{0}', space=sflag, size = 0x8, scoped, tag = 'scoped memory for tpu_custom_call.1']
    #allocation9 [shape = 's32[2]{0}', space=sflag, size = 0x8, scoped, tag = 'scoped memory for tpu_custom_call.1']
    #allocation10 [shape = 'u8[16384]{0}', space=vmem, size = 0x4000, scoped, tag = 'input window, operand 1']
    #allocation11 [shape = 's32[2]{0}', space=sflag, size = 0x8, scoped, tag = 'scoped memory for tpu_custom_call.1']
    #allocation12 [shape = 'u8[32768]{0}', space=vmem, size = 0x8000, scoped, tag = 'output window, operand 0']
    %15 = vsyncpa [#allocation8], 0
    %s16 = scalar_lea.sflag [#allocation8], 1
    %17 = vsyncpa %s16, 0
    %18 = vsyncpa [#allocation11], 0
    %s19 = scalar_lea.sflag [#allocation11], 1
    %20 = vsyncpa %s19, 0
    %21 = vsyncpa [#allocation9], 0
    %s22 = scalar_lea.sflag [#allocation9], 1
    %23 = vsyncpa %s22, 0
    loop: start=0, step=1, limit=10
    $region2: #{tpu_custom_call.1} parent=1 // loop_pre_header
      _
    $region3: #{tpu_custom_call.1} parent=1 // loop_header
      %s25 = sphi 0, %s29
      %p26 = scmp.ge.s32.totalorder %s25, 10
      %s32 = sphi 0, %s51
      %s33 = sphi 0, %s47
      %s34 = sphi 0, %s43
      %s35 = sphi 0, %s32
      %s36 = sphi 0, %s33
      %s37 = sphi 0, %s34
      %s38 = sphi 0, %s35
      %s39 = sphi 0, %s36
      %s40 = sphi 0, %s37
      %s56 = sphi 0, %s58
      %s59 = sphi 0, %s56
      %s60 = sphi 0, %s59
      %s76 = sphi 0, %s60
      %s84 = sphi 0, %s86
      %s87 = sphi 0, %s84
      %s88 = sphi 0, %s87
      %s104 = sphi 0, %s88
      %s108 = sphi 0, %s108
      %s110 = sphi 0, %s108
      %s111 = sphi 0, %s110
      %s125 = sphi 0, %s111
      %s129 = sphi 0, %s129
      %s131 = sphi 0, %s129
      %s132 = sphi 0, %s131
      %s146 = sphi 0, %s132
      %s150 = sphi 0, %s150
      %s152 = sphi 0, %s150
      %s153 = sphi 0, %s152
      %s167 = sphi 0, %s153
      %s171 = sphi 0, %s171
      %s173 = sphi 0, %s171
      %s174 = sphi 0, %s173
      %s188 = sphi 0, %s174
      %s192 = sphi 0, %s192
      %s194 = sphi 0, %s192
      %s195 = sphi 0, %s194
      %s209 = sphi 0, %s195
      %s213 = sphi 0, %s213
      %s215 = sphi 0, %s213
      %s216 = sphi 0, %s215
      %s230 = sphi 0, %s216
      %s234 = sphi 0, %s234
      %s236 = sphi 0, %s234
      %s237 = sphi 0, %s236
      %s251 = sphi 0, %s237
      %s259 = sphi 0, %s261
      %s262 = sphi 0, %s259
      %s263 = sphi 0, %s262
      %s279 = sphi 0, %s263
    $region4: #{tpu_custom_call.1} parent=1 // loop_header_branch
      %28 = sbr.rel (%p26) target = $region8
    $region5: #{tpu_custom_call.1} parent=1 // loop_body
      %s30 = ssub.s32 %s25, 1
      %s31 = ssub.s32 %s25, 2
      %s41 = sadd.s32 1, %s34
      %p42 = scmp.ge.s32.totalorder %s41, 2
      %s43 = scalar_select %p42, 0, %s41
      %s44 = sadd.s32 1, %s33
      %s45 = scalar_select %p42, %s44, %s33
      %p46 = scmp.ge.s32.totalorder %s45, 2
      %s47 = scalar_select %p46, 0, %s45
      %s48 = sadd.s32 1, %s32
      %s49 = scalar_select %p46, %s48, %s32
      %p50 = scmp.ge.s32.totalorder %s49, 2
      %s51 = scalar_select %p50, 0, %s49
      %s52 = ssub.s32 %s32, %s51
      %s53 = ssub.s32 %s33, %s47
      %s54 = sor.u32 %s52, %s53
      %p55 = scmp.eq.s32.totalorder %s54, 0
      %s57 = sadd.s32 %s56, 1
      %s58 = scalar_select %p55, %s56, %s57
      %p61 = pneg %p55
      %p62 = scmp.eq.s32.totalorder %s25, 7
      %p63 = por %p61, %p62
      %p64 = scmp.ne.s32.totalorder %s56, %s59
      %p65 = scmp.eq.s32.totalorder %s25, 0
      %p66 = por %p64, %p65
      %p67 = scmp.ne.s32.totalorder %s56, %s59
      %p68 = scmp.eq.s32.totalorder %s30, 7
      %p69 = por %p67, %p68
      %p70 = scmp.ne.s32.totalorder %s59, %s60
      %p71 = scmp.eq.s32.totalorder %s30, 0
      %p72 = por %p70, %p71
      %p73 = scmp.ne.s32.totalorder %s59, %s60
      %p74 = scmp.eq.s32.totalorder %s31, 7
      %p75 = por %p73, %p74
      %p77 = scmp.ne.s32.totalorder %s60, %s76
      %p78 = scmp.eq.s32.totalorder %s31, 0
      %p79 = por %p77, %p78
      %s80 = ssub.s32 %s32, %s51
      %s81 = ssub.s32 %s34, %s43
      %s82 = sor.u32 %s80, %s81
      %p83 = scmp.eq.s32.totalorder %s82, 0
      %s85 = sadd.s32 %s84, 1
      %s86 = scalar_select %p83, %s84, %s85
      %p89 = pneg %p83
      %p90 = scmp.eq.s32.totalorder %s25, 7
      %p91 = por %p89, %p90
      %p92 = scmp.ne.s32.totalorder %s84, %s87
      %p93 = scmp.eq.s32.totalorder %s25, 0
      %p94 = por %p92, %p93
      %p95 = scmp.ne.s32.totalorder %s84, %s87
      %p96 = scmp.eq.s32.totalorder %s30, 7
      %p97 = por %p95, %p96
      %p98 = scmp.ne.s32.totalorder %s87, %s88
      %p99 = scmp.eq.s32.totalorder %s30, 0
      %p100 = por %p98, %p99
      %p101 = scmp.ne.s32.totalorder %s87, %s88
      %p102 = scmp.eq.s32.totalorder %s31, 7
      %p103 = por %p101, %p102
      %p105 = scmp.ne.s32.totalorder %s88, %s104
      %p106 = scmp.eq.s32.totalorder %s31, 0
      %p107 = por %p105, %p106
      %s109 = sadd.s32 %s108, 1
      %p112 = scmp.eq.s32.totalorder %s25, 7
      %p113 = scmp.ne.s32.totalorder %s108, %s110
      %p114 = scmp.eq.s32.totalorder %s25, 0
      %p115 = por %p113, %p114
      %p116 = scmp.ne.s32.totalorder %s108, %s110
      %p117 = scmp.eq.s32.totalorder %s30, 7
      %p118 = por %p116, %p117
      %p119 = scmp.ne.s32.totalorder %s110, %s111
      %p120 = scmp.eq.s32.totalorder %s30, 0
      %p121 = por %p119, %p120
      %p122 = scmp.ne.s32.totalorder %s110, %s111
      %p123 = scmp.eq.s32.totalorder %s31, 7
      %p124 = por %p122, %p123
      %p126 = scmp.ne.s32.totalorder %s111, %s125
      %p127 = scmp.eq.s32.totalorder %s31, 0
      %p128 = por %p126, %p127
      %s130 = sadd.s32 %s129, 1
      %p133 = scmp.eq.s32.totalorder %s25, 7
      %p134 = scmp.ne.s32.totalorder %s129, %s131
      %p135 = scmp.eq.s32.totalorder %s25, 0
      %p136 = por %p134, %p135
      %p137 = scmp.ne.s32.totalorder %s129, %s131
      %p138 = scmp.eq.s32.totalorder %s30, 7
      %p139 = por %p137, %p138
      %p140 = scmp.ne.s32.totalorder %s131, %s132
      %p141 = scmp.eq.s32.totalorder %s30, 0
      %p142 = por %p140, %p141
      %p143 = scmp.ne.s32.totalorder %s131, %s132
      %p144 = scmp.eq.s32.totalorder %s31, 7
      %p145 = por %p143, %p144
      %p147 = scmp.ne.s32.totalorder %s132, %s146
      %p148 = scmp.eq.s32.totalorder %s31, 0
      %p149 = por %p147, %p148
      %s151 = sadd.s32 %s150, 1
      %p154 = scmp.eq.s32.totalorder %s25, 7
      %p155 = scmp.ne.s32.totalorder %s150, %s152
      %p156 = scmp.eq.s32.totalorder %s25, 0
      %p157 = por %p155, %p156
      %p158 = scmp.ne.s32.totalorder %s150, %s152
      %p159 = scmp.eq.s32.totalorder %s30, 7
      %p160 = por %p158, %p159
      %p161 = scmp.ne.s32.totalorder %s152, %s153
      %p162 = scmp.eq.s32.totalorder %s30, 0
      %p163 = por %p161, %p162
      %p164 = scmp.ne.s32.totalorder %s152, %s153
      %p165 = scmp.eq.s32.totalorder %s31, 7
      %p166 = por %p164, %p165
      %p168 = scmp.ne.s32.totalorder %s153, %s167
      %p169 = scmp.eq.s32.totalorder %s31, 0
      %p170 = por %p168, %p169
      %s172 = sadd.s32 %s171, 1
      %p175 = scmp.eq.s32.totalorder %s25, 7
      %p176 = scmp.ne.s32.totalorder %s171, %s173
      %p177 = scmp.eq.s32.totalorder %s25, 0
      %p178 = por %p176, %p177
      %p179 = scmp.ne.s32.totalorder %s171, %s173
      %p180 = scmp.eq.s32.totalorder %s30, 7
      %p181 = por %p179, %p180
      %p182 = scmp.ne.s32.totalorder %s173, %s174
      %p183 = scmp.eq.s32.totalorder %s30, 0
      %p184 = por %p182, %p183
      %p185 = scmp.ne.s32.totalorder %s173, %s174
      %p186 = scmp.eq.s32.totalorder %s31, 7
      %p187 = por %p185, %p186
      %p189 = scmp.ne.s32.totalorder %s174, %s188
      %p190 = scmp.eq.s32.totalorder %s31, 0
      %p191 = por %p189, %p190
      %s193 = sadd.s32 %s192, 1
      %p196 = scmp.eq.s32.totalorder %s25, 7
      %p197 = scmp.ne.s32.totalorder %s192, %s194
      %p198 = scmp.eq.s32.totalorder %s25, 0
      %p199 = por %p197, %p198
      %p200 = scmp.ne.s32.totalorder %s192, %s194
      %p201 = scmp.eq.s32.totalorder %s30, 7
      %p202 = por %p200, %p201
      %p203 = scmp.ne.s32.totalorder %s194, %s195
      %p204 = scmp.eq.s32.totalorder %s30, 0
      %p205 = por %p203, %p204
      %p206 = scmp.ne.s32.totalorder %s194, %s195
      %p207 = scmp.eq.s32.totalorder %s31, 7
      %p208 = por %p206, %p207
      %p210 = scmp.ne.s32.totalorder %s195, %s209
      %p211 = scmp.eq.s32.totalorder %s31, 0
      %p212 = por %p210, %p211
      %s214 = sadd.s32 %s213, 1
      %p217 = scmp.eq.s32.totalorder %s25, 7
      %p218 = scmp.ne.s32.totalorder %s213, %s215
      %p219 = scmp.eq.s32.totalorder %s25, 0
      %p220 = por %p218, %p219
      %p221 = scmp.ne.s32.totalorder %s213, %s215
      %p222 = scmp.eq.s32.totalorder %s30, 7
      %p223 = por %p221, %p222
      %p224 = scmp.ne.s32.totalorder %s215, %s216
      %p225 = scmp.eq.s32.totalorder %s30, 0
      %p226 = por %p224, %p225
      %p227 = scmp.ne.s32.totalorder %s215, %s216
      %p228 = scmp.eq.s32.totalorder %s31, 7
      %p229 = por %p227, %p228
      %p231 = scmp.ne.s32.totalorder %s216, %s230
      %p232 = scmp.eq.s32.totalorder %s31, 0
      %p233 = por %p231, %p232
      %s235 = sadd.s32 %s234, 1
      %p238 = scmp.eq.s32.totalorder %s25, 7
      %p239 = scmp.ne.s32.totalorder %s234, %s236
      %p240 = scmp.eq.s32.totalorder %s25, 0
      %p241 = por %p239, %p240
      %p242 = scmp.ne.s32.totalorder %s234, %s236
      %p243 = scmp.eq.s32.totalorder %s30, 7
      %p244 = por %p242, %p243
      %p245 = scmp.ne.s32.totalorder %s236, %s237
      %p246 = scmp.eq.s32.totalorder %s30, 0
      %p247 = por %p245, %p246
      %p248 = scmp.ne.s32.totalorder %s236, %s237
      %p249 = scmp.eq.s32.totalorder %s31, 7
      %p250 = por %p248, %p249
      %p252 = scmp.ne.s32.totalorder %s237, %s251
      %p253 = scmp.eq.s32.totalorder %s31, 0
      %p254 = por %p252, %p253
      %s255 = ssub.s32 %s32, %s51
      %s256 = ssub.s32 %s33, %s47
      %s257 = sor.u32 %s255, %s256
      %p258 = scmp.eq.s32.totalorder %s257, 0
      %s260 = sadd.s32 %s259, 1
      %s261 = scalar_select %p258, %s259, %s260
      %p264 = pneg %p258
      %p265 = scmp.eq.s32.totalorder %s25, 7
      %p266 = por %p264, %p265
      %p267 = scmp.ne.s32.totalorder %s259, %s262
      %p268 = scmp.eq.s32.totalorder %s25, 0
      %p269 = por %p267, %p268
      %p270 = scmp.ne.s32.totalorder %s259, %s262
      %p271 = scmp.eq.s32.totalorder %s30, 7
      %p272 = por %p270, %p271
      %p273 = scmp.ne.s32.totalorder %s262, %s263
      %p274 = scmp.eq.s32.totalorder %s30, 0
      %p275 = por %p273, %p274
      %p276 = scmp.ne.s32.totalorder %s262, %s263
      %p277 = scmp.eq.s32.totalorder %s31, 7
      %p278 = por %p276, %p277
      %p280 = scmp.ne.s32.totalorder %s263, %s279
      %p281 = scmp.eq.s32.totalorder %s31, 0
      %p282 = por %p280, %p281
      %p283 = scmp.le.s32.totalorder 1, %s25
      %p284 = scmp.lt.s32.totalorder %s25, 9
      %p285 = pnand %p283, %p284
      %p286 = pneg %p285
      // Predicated region
      $region9: #{tpu_custom_call.1} parent=5 // pred_check
        _
      $region10: #{tpu_custom_call.1} parent=5 // pred_check_branch
        %288 = sbr.rel (%p285) target = $region12
      $region11: #{tpu_custom_call.1} parent=5 // pred_region
        %s289 = ssub.s32 %s25, 1
        // Predicated region
        $region13: #{tpu_custom_call.1} parent=11 // pred_check
          %p290 = pneg %p121
        $region14: #{tpu_custom_call.1} parent=11 // pred_check_branch
          %292 = sbr.rel (%p290) target = $region16
        $region15: #{tpu_custom_call.1} parent=11 // pred_region
          _
        $region16: #{tpu_custom_call.1} parent=11 // pred_fallthru
          _
        // Predicated region
        $region17: #{tpu_custom_call.1} parent=11 // pred_check
          %p293 = pneg %p142
        $region18: #{tpu_custom_call.1} parent=11 // pred_check_branch
          %295 = sbr.rel (%p293) target = $region20
        $region19: #{tpu_custom_call.1} parent=11 // pred_region
          _
        $region20: #{tpu_custom_call.1} parent=11 // pred_fallthru
          _
        // Predicated region
        $region21: #{tpu_custom_call.1} parent=11 // pred_check
          %p296 = pneg %p163
        $region22: #{tpu_custom_call.1} parent=11 // pred_check_branch
          %298 = sbr.rel (%p296) target = $region24
        $region23: #{tpu_custom_call.1} parent=11 // pred_region
          _
        $region24: #{tpu_custom_call.1} parent=11 // pred_fallthru
          _
        // Predicated region
        $region25: #{tpu_custom_call.1} parent=11 // pred_check
          %p299 = pneg %p184
        $region26: #{tpu_custom_call.1} parent=11 // pred_check_branch
          %301 = sbr.rel (%p299) target = $region28
        $region27: #{tpu_custom_call.1} parent=11 // pred_region
          _
        $region28: #{tpu_custom_call.1} parent=11 // pred_fallthru
          _
        // Predicated region
        $region29: #{tpu_custom_call.1} parent=11 // pred_check
          %p302 = pneg %p205
        $region30: #{tpu_custom_call.1} parent=11 // pred_check_branch
          %304 = sbr.rel (%p302) target = $region32
        $region31: #{tpu_custom_call.1} parent=11 // pred_region
          _
        $region32: #{tpu_custom_call.1} parent=11 // pred_fallthru
          _
        // Predicated region
        $region33: #{tpu_custom_call.1} parent=11 // pred_check
          %p305 = pneg %p226
        $region34: #{tpu_custom_call.1} parent=11 // pred_check_branch
          %307 = sbr.rel (%p305) target = $region36
        $region35: #{tpu_custom_call.1} parent=11 // pred_region
          _
        $region36: #{tpu_custom_call.1} parent=11 // pred_fallthru
          _
        // Predicated region
        $region37: #{tpu_custom_call.1} parent=11 // pred_check
          %p308 = pneg %p247
        $region38: #{tpu_custom_call.1} parent=11 // pred_check_branch
          %310 = sbr.rel (%p308) target = $region40
        $region39: #{tpu_custom_call.1} parent=11 // pred_region
          _
        $region40: #{tpu_custom_call.1} parent=11 // pred_fallthru
          _
      $region12: #{tpu_custom_call.1} parent=5 // pred_fallthru
        _
      %p311 = scmp.lt.s32.totalorder %s25, 8
      // Predicated region
      $region41: #{tpu_custom_call.1} parent=5 // pred_check
        %p312 = pneg %p311
      $region42: #{tpu_custom_call.1} parent=5 // pred_check_branch
        %314 = sbr.rel (%p312) target = $region44
      $region43: #{tpu_custom_call.1} parent=5 // pred_region
        // Predicated region
        $region45: #{tpu_custom_call.1} parent=43 // pred_check
          %p315 = pneg %p66
        $region46: #{tpu_custom_call.1} parent=43 // pred_check_branch
          %317 = sbr.rel (%p315) target = $region48
        $region47: #{tpu_custom_call.1} parent=43 // pred_region
          %s318 = sand.u32 %s56, 1
          %s319 = scalar_lea.sflag [#allocation8], %s318
          %s320 = sand.u32 %s56, 1
          %s321 = smul.addr %s320, 16
          %s322 = scalar_lea.vmem [#allocation7], %s321
          %s324 = ssub.s32 256, 256
          %325 = vsyncadd %s319, %s324
          %s326 = smul.addr %s32, 8
          %s327 = sadd.s32 %s33, %s326
          %s328 = smul.addr %s327, 64
          %s329 = scalar_lea.hbm %s0, %s328
          %s330 = sshll.u32 %s322, 4
          %s331 = int_to_ptr.vmem [resolvable:$true] %s330
          %336 = dma.hbm_to_vmem [thread:$0]  %s329, 256, %s331, %s319, 128, 64, 4
        $region48: #{tpu_custom_call.1} parent=43 // pred_fallthru
          _
        // Predicated region
        $region49: #{tpu_custom_call.1} parent=43 // pred_check
          %p337 = pneg %p94
        $region50: #{tpu_custom_call.1} parent=43 // pred_check_branch
          %339 = sbr.rel (%p337) target = $region52
        $region51: #{tpu_custom_call.1} parent=43 // pred_region
          %s340 = sand.u32 %s84, 1
          %s341 = scalar_lea.sflag [#allocation11], %s340
          %s342 = sand.u32 %s84, 1
          %s343 = smul.addr %s342, 16
          %s344 = scalar_lea.vmem [#allocation10], %s343
          %s346 = ssub.s32 256, 256
          %347 = vsyncadd %s341, %s346
          %s348 = smul.addr %s32, 8
          %s349 = sadd.s32 %s34, %s348
          %s350 = smul.addr %s349, 64
          %s351 = scalar_lea.hbm %s1, %s350
          %s352 = sshll.u32 %s344, 4
          %s353 = int_to_ptr.vmem [resolvable:$true] %s352
          %358 = dma.hbm_to_vmem [thread:$0]  %s351, 256, %s353, %s341, 128, 64, 4
        $region52: #{tpu_custom_call.1} parent=43 // pred_fallthru
          _
      $region44: #{tpu_custom_call.1} parent=5 // pred_fallthru
        _
      %p359 = scmp.le.s32.totalorder 1, %s25
      %p360 = scmp.lt.s32.totalorder %s25, 9
      %p361 = pnand %p359, %p360
      %p362 = pneg %p361
      // Predicated region
      $region53: #{tpu_custom_call.1} parent=5 // pred_check
        _
      $region54: #{tpu_custom_call.1} parent=5 // pred_check_branch
        %364 = sbr.rel (%p361) target = $region56
      $region55: #{tpu_custom_call.1} parent=5 // pred_region
        %s365 = ssub.s32 %s25, 1
        %s366 = sand.u32 %s59, 1
        %s367 = scalar_lea.sflag [#allocation8], %s366
        %s368 = sand.u32 %s59, 1
        %s369 = smul.addr %s368, 16
        %s370 = scalar_lea.vmem [#allocation7], %s369
        // Predicated region
        $region57: #{tpu_custom_call.1} parent=55 // pred_check
          %p371 = pneg %p72
        $region58: #{tpu_custom_call.1} parent=55 // pred_check_branch
          %373 = sbr.rel (%p371) target = $region60
        $region59: #{tpu_custom_call.1} parent=55 // pred_region
          %374 = dma.done %s367, 256
        $region60: #{tpu_custom_call.1} parent=55 // pred_fallthru
          _
        %s375 = sand.u32 %s87, 1
        %s376 = scalar_lea.sflag [#allocation11], %s375
        %s377 = sand.u32 %s87, 1
        %s378 = smul.addr %s377, 16
        %s379 = scalar_lea.vmem [#allocation10], %s378
        // Predicated region
        $region61: #{tpu_custom_call.1} parent=55 // pred_check
          %p380 = pneg %p100
        $region62: #{tpu_custom_call.1} parent=55 // pred_check_branch
          %382 = sbr.rel (%p380) target = $region64
        $region63: #{tpu_custom_call.1} parent=55 // pred_region
          %383 = dma.done %s376, 256
        $region64: #{tpu_custom_call.1} parent=55 // pred_fallthru
          _
        %s384 = sand.u32 %s59, 1
        %s385 = scalar_lea.sflag [#allocation8], %s384
        %s386 = sand.u32 %s59, 1
        %s387 = smul.addr %s386, 16
        %s388 = scalar_lea.vmem [#allocation7], %s387
        %p389 = pneg %p72
        %p390 = pneg %p69
        %s391 = sand.u32 %s87, 1
        %s392 = scalar_lea.sflag [#allocation11], %s391
        %s393 = sand.u32 %s87, 1
        %s394 = smul.addr %s393, 16
        %s395 = scalar_lea.vmem [#allocation10], %s394
        %p396 = pneg %p100
        %p397 = pneg %p97
        %p398 = pneg %p121
        %p399 = pneg %p118
        %p400 = pneg %p142
        %p401 = pneg %p139
        %p402 = pneg %p163
        %p403 = pneg %p160
        %p404 = pneg %p184
        %p405 = pneg %p181
        %p406 = pneg %p205
        %p407 = pneg %p202
        %p408 = pneg %p226
        %p409 = pneg %p223
        %p410 = pneg %p247
        %p411 = pneg %p244
        %p412 = pneg %p275
        %p413 = pneg %p272
        %s414 = sand.u32 %s262, 1
        %s415 = scalar_lea.sflag [#allocation9], %s414
        %s416 = sand.u32 %s262, 1
        %s417 = smul.addr %s416, 32
        %s418 = scalar_lea.vmem [#allocation12], %s417
        %p420 = scmp.eq.s32.totalorder %s37, 0
        // Predicated region
        $region65: #{tpu_custom_call.1} parent=55 // pred_check
          %p421 = pneg %p420
        $region66: #{tpu_custom_call.1} parent=55 // pred_check_branch
          %423 = sbr.rel (%p421) target = $region68
        $region67: #{tpu_custom_call.1} parent=55 // pred_region
          %v424 = vld [vmem:[%s370] sm:$0xf]
          %v425 = vld [vmem:[%s370 + $0x4] sm:$0xf]
          %v426 = vld [vmem:[%s370 + $0x8] sm:$0xf]
          %v427 = vld [vmem:[%s370 + $0xc] sm:$0xf]
          %v428 = vunpack.c.l.bf16 %v424
          %v429 = vunpack.c.l.bf16 %v425
          %v430 = vunpack.c.l.bf16 %v426
          %v431 = vunpack.c.l.bf16 %v427
          %432 = vxpose.xlu0.b32.start [1/16] %v428, 128
          %433 = vxpose.xlu0.b32.cont [2/16] %v429, 128
          %434 = vxpose.xlu0.b32.cont [3/16] %v430, 128
          %435 = vxpose.xlu0.b32.cont [4/16] %v431, 128
          %436 = vxpose.xlu0.b32.cont [5/16] 0.0, 128
          %437 = vxpose.xlu0.b32.cont [6/16] 0.0, 128
          %438 = vxpose.xlu0.b32.cont [7/16] 0.0, 128
          %439 = vxpose.xlu0.b32.cont [8/16] 0.0, 128
          %440 = vxpose.xlu0.b32.cont [9/16] 0.0, 128
          %441 = vxpose.xlu0.b32.cont [10/16] 0.0, 128
          %442 = vxpose.xlu0.b32.cont [11/16] 0.0, 128
          %443 = vxpose.xlu0.b32.cont [12/16] 0.0, 128
          %444 = vxpose.xlu0.b32.cont [13/16] 0.0, 128
          %445 = vxpose.xlu0.b32.cont [14/16] 0.0, 128
          %446 = vxpose.xlu0.b32.cont [15/16] 0.0, 128
          %447 = vxpose.xlu0.b32.end [16/16] 0.0, 128
          %v448 = vpop.trf.xlu0
          %v449 = vpop.trf.xlu0
          %v450 = vpop.trf.xlu0
          %v451 = vpop.trf.xlu0
          %v452 = vpop.trf.xlu0
          %v453 = vpop.trf.xlu0
          %v454 = vpop.trf.xlu0
          %v455 = vpop.trf.xlu0
          %v456 = vpop.trf.xlu0
          %v457 = vpop.trf.xlu0
          %v458 = vpop.trf.xlu0
          %v459 = vpop.trf.xlu0
          %v460 = vpop.trf.xlu0
          %v461 = vpop.trf.xlu0
          %v462 = vpop.trf.xlu0
          %v463 = vpop.trf.xlu0
          %v464 = vpack.c.bf16 %v449, %v448
          %v465 = vpack.c.bf16 %v451, %v450
          %v466 = vpack.c.bf16 %v453, %v452
          %v467 = vpack.c.bf16 %v455, %v454
          %v468 = vpack.c.bf16 %v457, %v456
          %v469 = vpack.c.bf16 %v459, %v458
          %v470 = vpack.c.bf16 %v461, %v460
          %v471 = vpack.c.bf16 %v463, %v462
          %v472 = vld [vmem:[%s2] sm:$0xf]
          %v473 = vld [vmem:[%s2 + $0x4] sm:$0xf]
          %v474 = vld [vmem:[%s2 + $0x8] sm:$0xf]
          %v475 = vld [vmem:[%s2 + $0xc] sm:$0xf]
          %v476 = vld [vmem:[%s3] sm:$0x1]
          %v478 = vlaneseq
          %v479 = vshrl.u32 %v478, 7
          %v480 = vsub.s32 0, %v479
          %v481 = vrot.slane %v476, %v480
          %v487 = vunpack.c.l.b16 %v472
          %v488 = vunpack.c.l.b16 %v473
          %v489 = vunpack.c.l.b16 %v474
          %v490 = vunpack.c.l.b16 %v475
          %v491 = vpack.c.b16 %v488, %v487
          %v492 = vpack.c.b16 %v490, %v489
          %vm495 = vcmask 261120
          %v497 = vsel %vm495, %v464, 0
          %v500 = vsel %vm495, %v465, 0
          %v503 = vsel %vm495, %v466, 0
          %v506 = vsel %vm495, %v467, 0
          %v509 = vsel %vm495, %v468, 0
          %v512 = vsel %vm495, %v469, 0
          %v515 = vsel %vm495, %v470, 0
          %v518 = vsel %vm495, %v471, 0
          %520 = vmatprep.subr.bf16.mxu0 0
          %521 = vmatpush1.bf16.msra.mxu0 0
          %522 = vmatprep.subr.bf16.mxu0 0
          %523 = vmatpush1.bf16.msra.mxu0 0
          %524 = vmatprep.subr.bf16.mxu0 0
          %525 = vmatpush1.bf16.msra.mxu0 0
          %526 = vmatprep.subr.bf16.mxu0 0
          %527 = vmatpush1.bf16.msra.mxu0 0
          %528 = vmatprep.subr.bf16.mxu0 0
          %529 = vmatpush1.bf16.msra.mxu0 0
          %530 = vmatprep.subr.bf16.mxu0 0
          %531 = vmatpush1.bf16.msra.mxu0 0
          %532 = vmatprep.subr.bf16.mxu0 0
          %533 = vmatpush1.bf16.msra.mxu0 %v492
          %534 = vmatprep.subr.bf16.mxu0 0
          %535 = vmatpush1.bf16.msra.mxu0 %v491
          %536 = vmatprep.subr.bf16.mxu0 0
          %537 = vmatpush2.bf16.msra.mxu0 0
          %538 = vmatprep.subr.bf16.mxu0 0
          %539 = vmatpush2.bf16.msra.mxu0 0
          %540 = vmatprep.subr.bf16.mxu0 0
          %541 = vmatpush2.bf16.msra.mxu0 0
          %542 = vmatprep.subr.bf16.mxu0 0
          %543 = vmatpush2.bf16.msra.mxu0 0
          %544 = vmatprep.subr.bf16.mxu0 0
          %545 = vmatpush2.bf16.msra.mxu0 0
          %546 = vmatprep.subr.bf16.mxu0 0
          %547 = vmatpush2.bf16.msra.mxu0 0
          %548 = vmatprep.subr.bf16.mxu0 0
          %549 = vmatpush2.bf16.msra.mxu0 0
          %550 = vmatprep.subr.bf16.mxu0 0
          %551 = vmatpush2.bf16.msra.mxu0 0
          %552 = vmatprep.mubr.bf16.mxu0 0
          %553 = vmatmul.mubr.bf16.gmra.mxu0 %v497
          %v554 = vpop.f32.mrf.mxu0
          %v555 = vadd.f32 %v481, %v554
          %v556 = vpop.f32.mrf.mxu0
          %v557 = vpop.f32.mrf.mxu0
          %v558 = vadd.f32 %v481, %v557
          %v559 = vpop.f32.mrf.mxu0
          %560 = vmatprep.mubr.bf16.mxu0 0
          %561 = vmatmul.mubr.bf16.gmra.mxu0 %v500
          %v562 = vpop.f32.mrf.mxu0
          %v563 = vadd.f32 %v481, %v562
          %v564 = vpop.f32.mrf.mxu0
          %v565 = vpop.f32.mrf.mxu0
          %v566 = vadd.f32 %v481, %v565
          %v567 = vpop.f32.mrf.mxu0
          %568 = vmatprep.mubr.bf16.mxu0 0
          %569 = vmatmul.mubr.bf16.gmra.mxu0 %v503
          %v570 = vpop.f32.mrf.mxu0
          %v571 = vadd.f32 %v481, %v570
          %v572 = vpop.f32.mrf.mxu0
          %v573 = vpop.f32.mrf.mxu0
          %v574 = vadd.f32 %v481, %v573
          %v575 = vpop.f32.mrf.mxu0
          %576 = vmatprep.mubr.bf16.mxu0 0
          %577 = vmatmul.mubr.bf16.gmra.mxu0 %v506
          %v578 = vpop.f32.mrf.mxu0
          %v579 = vadd.f32 %v481, %v578
          %v580 = vpop.f32.mrf.mxu0
          %v581 = vpop.f32.mrf.mxu0
          %v582 = vadd.f32 %v481, %v581
          %v583 = vpop.f32.mrf.mxu0
          %584 = vmatprep.mubr.bf16.mxu0 0
          %585 = vmatmul.mubr.bf16.gmra.mxu0 %v509
          %v586 = vpop.f32.mrf.mxu0
          %v587 = vadd.f32 %v481, %v586
          %v588 = vpop.f32.mrf.mxu0
          %v589 = vpop.f32.mrf.mxu0
          %v590 = vadd.f32 %v481, %v589
          %v591 = vpop.f32.mrf.mxu0
          %592 = vmatprep.mubr.bf16.mxu0 0
          %593 = vmatmul.mubr.bf16.gmra.mxu0 %v512
          %v594 = vpop.f32.mrf.mxu0
          %v595 = vadd.f32 %v481, %v594
          %v596 = vpop.f32.mrf.mxu0
          %v597 = vpop.f32.mrf.mxu0
          %v598 = vadd.f32 %v481, %v597
          %v599 = vpop.f32.mrf.mxu0
          %600 = vmatprep.mubr.bf16.mxu0 0
          %601 = vmatmul.mubr.bf16.gmra.mxu0 %v515
          %v602 = vpop.f32.mrf.mxu0
          %v603 = vadd.f32 %v481, %v602
          %v604 = vpop.f32.mrf.mxu0
          %v605 = vpop.f32.mrf.mxu0
          %v606 = vadd.f32 %v481, %v605
          %v607 = vpop.f32.mrf.mxu0
          %608 = vmatprep.mubr.bf16.mxu0 0
          %609 = vmatmul.mubr.bf16.gmra.mxu0 %v518
          %v610 = vpop.f32.mrf.mxu0
          %v611 = vadd.f32 %v481, %v610
          %v612 = vpop.f32.mrf.mxu0
          %v613 = vpop.f32.mrf.mxu0
          %v614 = vadd.f32 %v481, %v613
          %v615 = vpop.f32.mrf.mxu0
          %616 = vdwg.mxu0
          %vm617 = vcmask 31744
          %618 = vst.msk [vmem:[#allocation2] sm:$0xff] %vm617, %v555
          %619 = vst.msk [vmem:[#allocation2 + $0x8] sm:$0xff] %vm617, %v558
          %620 = vst.msk [vmem:[#allocation2 + $0x10] sm:$0xff] %vm617, %v563
          %621 = vst.msk [vmem:[#allocation2 + $0x18] sm:$0xff] %vm617, %v566
          %622 = vst.msk [vmem:[#allocation2 + $0x20] sm:$0xff] %vm617, %v571
          %623 = vst.msk [vmem:[#allocation2 + $0x28] sm:$0xff] %vm617, %v574
          %624 = vst.msk [vmem:[#allocation2 + $0x30] sm:$0xff] %vm617, %v579
          %625 = vst.msk [vmem:[#allocation2 + $0x38] sm:$0xff] %vm617, %v582
          %626 = vst.msk [vmem:[#allocation2 + $0x40] sm:$0xff] %vm617, %v587
          %627 = vst.msk [vmem:[#allocation2 + $0x48] sm:$0xff] %vm617, %v590
          %628 = vst.msk [vmem:[#allocation2 + $0x50] sm:$0xff] %vm617, %v595
          %629 = vst.msk [vmem:[#allocation2 + $0x58] sm:$0xff] %vm617, %v598
          %630 = vst.msk [vmem:[#allocation2 + $0x60] sm:$0xff] %vm617, %v603
          %631 = vst.msk [vmem:[#allocation2 + $0x68] sm:$0xff] %vm617, %v606
          %632 = vst.msk [vmem:[#allocation2 + $0x70] sm:$0xff] %vm617, %v611
          %633 = vst.msk [vmem:[#allocation2 + $0x78] sm:$0xff] %vm617, %v614
          %vm634 = vcmask 7168
          %635 = vst.msk [vmem:[#allocation3] sm:$0xff] %vm634, -inf
          %636 = vst.msk [vmem:[#allocation3 + $0x8] sm:$0xff] %vm634, -inf
          %637 = vst.msk [vmem:[#allocation3 + $0x10] sm:$0xff] %vm634, -inf
          %638 = vst.msk [vmem:[#allocation3 + $0x18] sm:$0xff] %vm634, -inf
          %639 = vst.msk [vmem:[#allocation3 + $0x20] sm:$0xff] %vm634, -inf
          %640 = vst.msk [vmem:[#allocation3 + $0x28] sm:$0xff] %vm634, -inf
          %641 = vst.msk [vmem:[#allocation3 + $0x30] sm:$0xff] %vm634, -inf
          %642 = vst.msk [vmem:[#allocation3 + $0x38] sm:$0xff] %vm634, -inf
          %643 = vst.msk [vmem:[#allocation3 + $0x40] sm:$0xff] %vm634, -inf
          %644 = vst.msk [vmem:[#allocation3 + $0x48] sm:$0xff] %vm634, -inf
          %645 = vst.msk [vmem:[#allocation3 + $0x50] sm:$0xff] %vm634, -inf
          %646 = vst.msk [vmem:[#allocation3 + $0x58] sm:$0xff] %vm634, -inf
          %647 = vst.msk [vmem:[#allocation3 + $0x60] sm:$0xff] %vm634, -inf
          %648 = vst.msk [vmem:[#allocation3 + $0x68] sm:$0xff] %vm634, -inf
          %649 = vst.msk [vmem:[#allocation3 + $0x70] sm:$0xff] %vm634, -inf
          %650 = vst.msk [vmem:[#allocation3 + $0x78] sm:$0xff] %vm634, -inf
          %651 = vst.msk [vmem:[#allocation4] sm:$0xff] %vm634, 0.0
          %652 = vst.msk [vmem:[#allocation4 + $0x8] sm:$0xff] %vm634, 0.0
          %653 = vst.msk [vmem:[#allocation4 + $0x10] sm:$0xff] %vm634, 0.0
          %654 = vst.msk [vmem:[#allocation4 + $0x18] sm:$0xff] %vm634, 0.0
          %655 = vst.msk [vmem:[#allocation4 + $0x20] sm:$0xff] %vm634, 0.0
          %656 = vst.msk [vmem:[#allocation4 + $0x28] sm:$0xff] %vm634, 0.0
          %657 = vst.msk [vmem:[#allocation4 + $0x30] sm:$0xff] %vm634, 0.0
          %658 = vst.msk [vmem:[#allocation4 + $0x38] sm:$0xff] %vm634, 0.0
          %659 = vst.msk [vmem:[#allocation4 + $0x40] sm:$0xff] %vm634, 0.0
          %660 = vst.msk [vmem:[#allocation4 + $0x48] sm:$0xff] %vm634, 0.0
          %661 = vst.msk [vmem:[#allocation4 + $0x50] sm:$0xff] %vm634, 0.0
          %662 = vst.msk [vmem:[#allocation4 + $0x58] sm:$0xff] %vm634, 0.0
          %663 = vst.msk [vmem:[#allocation4 + $0x60] sm:$0xff] %vm634, 0.0
          %664 = vst.msk [vmem:[#allocation4 + $0x68] sm:$0xff] %vm634, 0.0
          %665 = vst.msk [vmem:[#allocation4 + $0x70] sm:$0xff] %vm634, 0.0
          %666 = vst.msk [vmem:[#allocation4 + $0x78] sm:$0xff] %vm634, 0.0
          %667 = vst.msk [vmem:[#allocation5] sm:$0xff] %vm495, 0.0
          %668 = vst.msk [vmem:[#allocation5 + $0x8] sm:$0xff] %vm495, 0.0
          %669 = vst.msk [vmem:[#allocation5 + $0x10] sm:$0xff] %vm495, 0.0
          %670 = vst.msk [vmem:[#allocation5 + $0x18] sm:$0xff] %vm495, 0.0
          %671 = vst.msk [vmem:[#allocation5 + $0x20] sm:$0xff] %vm495, 0.0
          %672 = vst.msk [vmem:[#allocation5 + $0x28] sm:$0xff] %vm495, 0.0
          %673 = vst.msk [vmem:[#allocation5 + $0x30] sm:$0xff] %vm495, 0.0
          %674 = vst.msk [vmem:[#allocation5 + $0x38] sm:$0xff] %vm495, 0.0
          %675 = vst.msk [vmem:[#allocation5 + $0x40] sm:$0xff] %vm495, 0.0
          %676 = vst.msk [vmem:[#allocation5 + $0x48] sm:$0xff] %vm495, 0.0
          %677 = vst.msk [vmem:[#allocation5 + $0x50] sm:$0xff] %vm495, 0.0
          %678 = vst.msk [vmem:[#allocation5 + $0x58] sm:$0xff] %vm495, 0.0
          %679 = vst.msk [vmem:[#allocation5 + $0x60] sm:$0xff] %vm495, 0.0
          %680 = vst.msk [vmem:[#allocation5 + $0x68] sm:$0xff] %vm495, 0.0
          %681 = vst.msk [vmem:[#allocation5 + $0x70] sm:$0xff] %vm495, 0.0
          %682 = vst.msk [vmem:[#allocation5 + $0x78] sm:$0xff] %vm495, 0.0
        $region68: #{tpu_custom_call.1} parent=55 // pred_fallthru
          _
        %v683 = vld [vmem:[%s379] sm:$0xf]
        %v684 = vld [vmem:[%s379 + $0x4] sm:$0xf]
        %v685 = vld [vmem:[%s379 + $0x8] sm:$0xf]
        %v686 = vld [vmem:[%s379 + $0xc] sm:$0xf]
        %v687 = vld [vmem:[%s4] sm:$0x3]
        %v688 = vld [vmem:[%s5] sm:$0xf]
        %690 = vset.pattern.permute.xlu0 0
        %691 = vperm.xlu0 %690, %v688
        %v692 = vpop.permute.xlu0 %691
        %v698 = vunpack.c.l.b16 %v683
        %v699 = vunpack.c.l.b16 %v684
        %v700 = vunpack.c.l.b16 %v685
        %v701 = vunpack.c.l.b16 %v686
        %v702 = vpack.c.b16 %v699, %v698
        %v703 = vpack.c.b16 %v701, %v700
        %vm706 = vcmask 261120
        %v708 = vsel %vm706, %v687, 0
        %710 = vmatprep.subr.bf16.mxu0 0
        %711 = vmatpush1.bf16.msra.mxu0 0
        %712 = vmatprep.subr.bf16.mxu0 0
        %713 = vmatpush1.bf16.msra.mxu0 0
        %714 = vmatprep.subr.bf16.mxu0 0
        %715 = vmatpush1.bf16.msra.mxu0 0
        %716 = vmatprep.subr.bf16.mxu0 0
        %717 = vmatpush1.bf16.msra.mxu0 0
        %718 = vmatprep.subr.bf16.mxu0 0
        %719 = vmatpush1.bf16.msra.mxu0 0
        %720 = vmatprep.subr.bf16.mxu0 0
        %721 = vmatpush1.bf16.msra.mxu0 0
        %722 = vmatprep.subr.bf16.mxu0 0
        %723 = vmatpush1.bf16.msra.mxu0 %v703
        %724 = vmatprep.subr.bf16.mxu0 0
        %725 = vmatpush1.bf16.msra.mxu0 %v702
        %726 = vmatprep.subr.bf16.mxu0 0
        %727 = vmatpush2.bf16.msra.mxu0 0
        %728 = vmatprep.subr.bf16.mxu0 0
        %729 = vmatpush2.bf16.msra.mxu0 0
        %730 = vmatprep.subr.bf16.mxu0 0
        %731 = vmatpush2.bf16.msra.mxu0 0
        %732 = vmatprep.subr.bf16.mxu0 0
        %733 = vmatpush2.bf16.msra.mxu0 0
        %734 = vmatprep.subr.bf16.mxu0 0
        %735 = vmatpush2.bf16.msra.mxu0 0
        %736 = vmatprep.subr.bf16.mxu0 0
        %737 = vmatpush2.bf16.msra.mxu0 0
        %738 = vmatprep.subr.bf16.mxu0 0
        %739 = vmatpush2.bf16.msra.mxu0 0
        %740 = vmatprep.subr.bf16.mxu0 0
        %741 = vmatpush2.bf16.msra.mxu0 0
        %742 = vmatprep.mubr.bf16.mxu0 0
        %743 = vmatmul.mubr.bf16.gmra.mxu0 %v708
        %v744 = vpop.f32.mrf.mxu0
        %v745 = vadd.f32 %v692, %v744
        %v746 = vpop.f32.mrf.mxu0
        %v747 = vpop.f32.mrf.mxu0
        %v748 = vpop.f32.mrf.mxu0
        %749 = vdwg.mxu0
        %v750 = vld [vmem:[%s6] sm:$0xf]
        %v751 = vld [vmem:[%s6 + $0x4] sm:$0xf]
        %v752 = vld [vmem:[%s6 + $0x8] sm:$0xf]
        %v753 = vld [vmem:[%s6 + $0xc] sm:$0xf]
        %v754 = vld [vmem:[%s7] sm:$0xff]
        %v755 = vld [vmem:[%s7 + $0x8] sm:$0xff]
        %v756 = vld [vmem:[%s7 + $0x10] sm:$0xff]
        %v757 = vld [vmem:[%s7 + $0x18] sm:$0xff]
        %759 = vset.pattern.permute.xlu0 0
        %760 = vperm.xlu0 %759, %v754
        %v761 = vpop.permute.xlu0 %760
        %764 = vset.pattern.permute.xlu0 0
        %765 = vperm.xlu0 %764, %v755
        %v766 = vpop.permute.xlu0 %765
        %769 = vset.pattern.permute.xlu0 0
        %770 = vperm.xlu0 %769, %v756
        %v771 = vpop.permute.xlu0 %770
        %774 = vset.pattern.permute.xlu0 0
        %775 = vperm.xlu0 %774, %v757
        %v776 = vpop.permute.xlu0 %775
        %v782 = vunpack.c.l.b16 %v750
        %v783 = vunpack.c.l.b16 %v751
        %v784 = vunpack.c.l.b16 %v752
        %v785 = vunpack.c.l.b16 %v753
        %v786 = vpack.c.b16 %v783, %v782
        %v787 = vpack.c.b16 %v785, %v784
        %v789 = vsel %vm706, %v786, 0
        %v792 = vsel %vm706, %v787, 0
        %794 = vmatprep.subr.bf16.mxu0 0
        %795 = vmatpush1.bf16.msra.mxu0 0
        %796 = vmatprep.subr.bf16.mxu0 0
        %797 = vmatpush1.bf16.msra.mxu0 0
        %798 = vmatprep.subr.bf16.mxu0 0
        %799 = vmatpush1.bf16.msra.mxu0 0
        %800 = vmatprep.subr.bf16.mxu0 0
        %801 = vmatpush1.bf16.msra.mxu0 0
        %802 = vmatprep.subr.bf16.mxu0 0
        %803 = vmatpush1.bf16.msra.mxu0 0
        %804 = vmatprep.subr.bf16.mxu0 0
        %805 = vmatpush1.bf16.msra.mxu0 0
        %806 = vmatprep.subr.bf16.mxu0 0
        %807 = vmatpush1.bf16.msra.mxu0 %v703
        %808 = vmatprep.subr.bf16.mxu0 0
        %809 = vmatpush1.bf16.msra.mxu0 %v702
        %810 = vmatprep.subr.bf16.mxu0 0
        %811 = vmatpush2.bf16.msra.mxu0 0
        %812 = vmatprep.subr.bf16.mxu0 0
        %813 = vmatpush2.bf16.msra.mxu0 0
        %814 = vmatprep.subr.bf16.mxu0 0
        %815 = vmatpush2.bf16.msra.mxu0 0
        %816 = vmatprep.subr.bf16.mxu0 0
        %817 = vmatpush2.bf16.msra.mxu0 0
        %818 = vmatprep.subr.bf16.mxu0 0
        %819 = vmatpush2.bf16.msra.mxu0 0
        %820 = vmatprep.subr.bf16.mxu0 0
        %821 = vmatpush2.bf16.msra.mxu0 0
        %822 = vmatprep.subr.bf16.mxu0 0
        %823 = vmatpush2.bf16.msra.mxu0 0
        %824 = vmatprep.subr.bf16.mxu0 0
        %825 = vmatpush2.bf16.msra.mxu0 0
        %826 = vmatprep.mubr.bf16.mxu0 0
        %827 = vmatmul.mubr.bf16.gmra.mxu0 %v789
        %v828 = vpop.f32.mrf.mxu0
        %v829 = vadd.f32 %v761, %v828
        %v830 = vpop.f32.mrf.mxu0
        %v831 = vpop.f32.mrf.mxu0
        %v832 = vadd.f32 %v766, %v831
        %v833 = vpop.f32.mrf.mxu0
        %834 = vmatprep.mubr.bf16.mxu0 0
        %835 = vmatmul.mubr.bf16.gmra.mxu0 %v792
        %v836 = vpop.f32.mrf.mxu0
        %v837 = vadd.f32 %v771, %v836
        %v838 = vpop.f32.mrf.mxu0
        %v839 = vpop.f32.mrf.mxu0
        %v840 = vadd.f32 %v776, %v839
        %v841 = vpop.f32.mrf.mxu0
        %842 = vdwg.mxu0
        %v843 = vld [vmem:[#allocation2] sm:$0xff]
        %v844 = vld [vmem:[#allocation2 + $0x8] sm:$0xff]
        %v845 = vld [vmem:[#allocation2 + $0x10] sm:$0xff]
        %v846 = vld [vmem:[#allocation2 + $0x18] sm:$0xff]
        %v847 = vld [vmem:[#allocation2 + $0x20] sm:$0xff]
        %v848 = vld [vmem:[#allocation2 + $0x28] sm:$0xff]
        %v849 = vld [vmem:[#allocation2 + $0x30] sm:$0xff]
        %v850 = vld [vmem:[#allocation2 + $0x38] sm:$0xff]
        %v851 = vld [vmem:[#allocation2 + $0x40] sm:$0xff]
        %v852 = vld [vmem:[#allocation2 + $0x48] sm:$0xff]
        %v853 = vld [vmem:[#allocation2 + $0x50] sm:$0xff]
        %v854 = vld [vmem:[#allocation2 + $0x58] sm:$0xff]
        %v855 = vld [vmem:[#allocation2 + $0x60] sm:$0xff]
        %v856 = vld [vmem:[#allocation2 + $0x68] sm:$0xff]
        %v857 = vld [vmem:[#allocation2 + $0x70] sm:$0xff]
        %v858 = vld [vmem:[#allocation2 + $0x78] sm:$0xff]
        %v859 = vpack.c.bf16 %v844, %v843
        %v860 = vpack.c.bf16 %v846, %v845
        %v861 = vpack.c.bf16 %v848, %v847
        %v862 = vpack.c.bf16 %v850, %v849
        %v863 = vpack.c.bf16 %v852, %v851
        %v864 = vpack.c.bf16 %v854, %v853
        %v865 = vpack.c.bf16 %v856, %v855
        %v866 = vpack.c.bf16 %v858, %v857
        %v867 = vpack.c.bf16 %v745, %v745
        %vm868 = vcmask 31744
        %v870 = vsel %vm868, %v859, 0
        %v873 = vsel %vm868, %v860, 0
        %v876 = vsel %vm868, %v861, 0
        %v879 = vsel %vm868, %v862, 0
        %v882 = vsel %vm868, %v863, 0
        %v885 = vsel %vm868, %v864, 0
        %v888 = vsel %vm868, %v865, 0
        %v891 = vsel %vm868, %v866, 0
        %vm893 = vcmask 1041408
        %v895 = vsel %vm893, %v867, 0
        %897 = vmatprep.subr.bf16.mxu0 0
        %898 = vmatpush1.bf16.msra.mxu0 0
        %899 = vmatprep.subr.bf16.mxu0 0
        %900 = vmatpush1.bf16.msra.mxu0 0
        %901 = vmatprep.subr.bf16.mxu0 0
        %902 = vmatpush1.bf16.msra.mxu0 0
        %903 = vmatprep.subr.bf16.mxu0 0
        %904 = vmatpush1.bf16.msra.mxu0 0
        %905 = vmatprep.subr.bf16.mxu0 0
        %906 = vmatpush1.bf16.msra.mxu0 0
        %907 = vmatprep.subr.bf16.mxu0 0
        %908 = vmatpush1.bf16.msra.mxu0 0
        %909 = vmatprep.subr.bf16.mxu0 0
        %910 = vmatpush1.bf16.msra.mxu0 0
        %911 = vmatprep.subr.bf16.mxu0 0
        %912 = vmatpush1.bf16.msra.mxu0 %v895
        %913 = vmatprep.subr.bf16.mxu0 0
        %914 = vmatpush2.bf16.msra.mxu0 0
        %915 = vmatprep.subr.bf16.mxu0 0
        %916 = vmatpush2.bf16.msra.mxu0 0
        %917 = vmatprep.subr.bf16.mxu0 0
        %918 = vmatpush2.bf16.msra.mxu0 0
        %919 = vmatprep.subr.bf16.mxu0 0
        %920 = vmatpush2.bf16.msra.mxu0 0
        %921 = vmatprep.subr.bf16.mxu0 0
        %922 = vmatpush2.bf16.msra.mxu0 0
        %923 = vmatprep.subr.bf16.mxu0 0
        %924 = vmatpush2.bf16.msra.mxu0 0
        %925 = vmatprep.subr.bf16.mxu0 0
        %926 = vmatpush2.bf16.msra.mxu0 0
        %927 = vmatprep.subr.bf16.mxu0 0
        %928 = vmatpush2.bf16.msra.mxu0 0
        %929 = vmatprep.mubr.bf16.mxu0 0
        %930 = vmatmul.mubr.bf16.gmra.mxu0 %v870
        %v931 = vpop.f32.mrf.mxu0
        %v932 = vadd.f32 0.0, %v931
        %v933 = vpop.f32.mrf.mxu0
        %v934 = vpop.f32.mrf.mxu0
        %v935 = vadd.f32 0.0, %v934
        %v936 = vpop.f32.mrf.mxu0
        %937 = vmatprep.mubr.bf16.mxu0 0
        %938 = vmatmul.mubr.bf16.gmra.mxu0 %v873
        %v939 = vpop.f32.mrf.mxu0
        %v940 = vadd.f32 0.0, %v939
        %v941 = vpop.f32.mrf.mxu0
        %v942 = vpop.f32.mrf.mxu0
        %v943 = vadd.f32 0.0, %v942
        %v944 = vpop.f32.mrf.mxu0
        %945 = vmatprep.mubr.bf16.mxu0 0
        %946 = vmatmul.mubr.bf16.gmra.mxu0 %v876
        %v947 = vpop.f32.mrf.mxu0
        %v948 = vadd.f32 0.0, %v947
        %v949 = vpop.f32.mrf.mxu0
        %v950 = vpop.f32.mrf.mxu0
        %v951 = vadd.f32 0.0, %v950
        %v952 = vpop.f32.mrf.mxu0
        %953 = vmatprep.mubr.bf16.mxu0 0
        %954 = vmatmul.mubr.bf16.gmra.mxu0 %v879
        %v955 = vpop.f32.mrf.mxu0
        %v956 = vadd.f32 0.0, %v955
        %v957 = vpop.f32.mrf.mxu0
        %v958 = vpop.f32.mrf.mxu0
        %v959 = vadd.f32 0.0, %v958
        %v960 = vpop.f32.mrf.mxu0
        %961 = vmatprep.mubr.bf16.mxu0 0
        %962 = vmatmul.mubr.bf16.gmra.mxu0 %v882
        %v963 = vpop.f32.mrf.mxu0
        %v964 = vadd.f32 0.0, %v963
        %v965 = vpop.f32.mrf.mxu0
        %v966 = vpop.f32.mrf.mxu0
        %v967 = vadd.f32 0.0, %v966
        %v968 = vpop.f32.mrf.mxu0
        %969 = vmatprep.mubr.bf16.mxu0 0
        %970 = vmatmul.mubr.bf16.gmra.mxu0 %v885
        %v971 = vpop.f32.mrf.mxu0
        %v972 = vadd.f32 0.0, %v971
        %v973 = vpop.f32.mrf.mxu0
        %v974 = vpop.f32.mrf.mxu0
        %v975 = vadd.f32 0.0, %v974
        %v976 = vpop.f32.mrf.mxu0
        %977 = vmatprep.mubr.bf16.mxu0 0
        %978 = vmatmul.mubr.bf16.gmra.mxu0 %v888
        %v979 = vpop.f32.mrf.mxu0
        %v980 = vadd.f32 0.0, %v979
        %v981 = vpop.f32.mrf.mxu0
        %v982 = vpop.f32.mrf.mxu0
        %v983 = vadd.f32 0.0, %v982
        %v984 = vpop.f32.mrf.mxu0
        %985 = vmatprep.mubr.bf16.mxu0 0
        %986 = vmatmul.mubr.bf16.gmra.mxu0 %v891
        %v987 = vpop.f32.mrf.mxu0
        %v988 = vadd.f32 0.0, %v987
        %v989 = vpop.f32.mrf.mxu0
        %v990 = vpop.f32.mrf.mxu0
        %v991 = vadd.f32 0.0, %v990
        %v992 = vpop.f32.mrf.mxu0
        %993 = vdwg.mxu0
        %v994 = vld [vmem:[#allocation3] sm:$0xff]
        %v995 = vld [vmem:[#allocation3 + $0x8] sm:$0xff]
        %v996 = vld [vmem:[#allocation3 + $0x10] sm:$0xff]
        %v997 = vld [vmem:[#allocation3 + $0x18] sm:$0xff]
        %v998 = vld [vmem:[#allocation3 + $0x20] sm:$0xff]
        %v999 = vld [vmem:[#allocation3 + $0x28] sm:$0xff]
        %v1000 = vld [vmem:[#allocation3 + $0x30] sm:$0xff]
        %v1001 = vld [vmem:[#allocation3 + $0x38] sm:$0xff]
        %v1002 = vld [vmem:[#allocation3 + $0x40] sm:$0xff]
        %v1003 = vld [vmem:[#allocation3 + $0x48] sm:$0xff]
        %v1004 = vld [vmem:[#allocation3 + $0x50] sm:$0xff]
        %v1005 = vld [vmem:[#allocation3 + $0x58] sm:$0xff]
        %v1006 = vld [vmem:[#allocation3 + $0x60] sm:$0xff]
        %v1007 = vld [vmem:[#allocation3 + $0x68] sm:$0xff]
        %v1008 = vld [vmem:[#allocation3 + $0x70] sm:$0xff]
        %v1009 = vld [vmem:[#allocation3 + $0x78] sm:$0xff]
        %1010 = vmax.xlane.f32.xlu0 %v932
        %v1011 = vpop.xlane.xlu0 %1010
        %1012 = vmax.xlane.f32.xlu0 %v935
        %v1013 = vpop.xlane.xlu0 %1012
        %1014 = vmax.xlane.f32.xlu0 %v940
        %v1015 = vpop.xlane.xlu0 %1014
        %1016 = vmax.xlane.f32.xlu0 %v943
        %v1017 = vpop.xlane.xlu0 %1016
        %1018 = vmax.xlane.f32.xlu0 %v948
        %v1019 = vpop.xlane.xlu0 %1018
        %1020 = vmax.xlane.f32.xlu0 %v951
        %v1021 = vpop.xlane.xlu0 %1020
        %1022 = vmax.xlane.f32.xlu0 %v956
        %v1023 = vpop.xlane.xlu0 %1022
        %1024 = vmax.xlane.f32.xlu0 %v959
        %v1025 = vpop.xlane.xlu0 %1024
        %1026 = vmax.xlane.f32.xlu0 %v964
        %v1027 = vpop.xlane.xlu0 %1026
        %1028 = vmax.xlane.f32.xlu0 %v967
        %v1029 = vpop.xlane.xlu0 %1028
        %1030 = vmax.xlane.f32.xlu0 %v972
        %v1031 = vpop.xlane.xlu0 %1030
        %1032 = vmax.xlane.f32.xlu0 %v975
        %v1033 = vpop.xlane.xlu0 %1032
        %1034 = vmax.xlane.f32.xlu0 %v980
        %v1035 = vpop.xlane.xlu0 %1034
        %1036 = vmax.xlane.f32.xlu0 %v983
        %v1037 = vpop.xlane.xlu0 %1036
        %1038 = vmax.xlane.f32.xlu0 %v988
        %v1039 = vpop.xlane.xlu0 %1038
        %1040 = vmax.xlane.f32.xlu0 %v991
        %v1041 = vpop.xlane.xlu0 %1040
        %v1042 = vmax.f32 %v994, %v1011
        %v1043 = vmax.f32 %v995, %v1013
        %v1044 = vmax.f32 %v996, %v1015
        %v1045 = vmax.f32 %v997, %v1017
        %v1046 = vmax.f32 %v998, %v1019
        %v1047 = vmax.f32 %v999, %v1021
        %v1048 = vmax.f32 %v1000, %v1023
        %v1049 = vmax.f32 %v1001, %v1025
        %v1050 = vmax.f32 %v1002, %v1027
        %v1051 = vmax.f32 %v1003, %v1029
        %v1052 = vmax.f32 %v1004, %v1031
        %v1053 = vmax.f32 %v1005, %v1033
        %v1054 = vmax.f32 %v1006, %v1035
        %v1055 = vmax.f32 %v1007, %v1037
        %v1056 = vmax.f32 %v1008, %v1039
        %v1057 = vmax.f32 %v1009, %v1041
        %v1058 = vsub.f32 %v994, %v1042
        %v1059 = vsub.f32 %v995, %v1043
        %v1060 = vsub.f32 %v996, %v1044
        %v1061 = vsub.f32 %v997, %v1045
        %v1062 = vsub.f32 %v998, %v1046
        %v1063 = vsub.f32 %v999, %v1047
        %v1064 = vsub.f32 %v1000, %v1048
        %v1065 = vsub.f32 %v1001, %v1049
        %v1066 = vsub.f32 %v1002, %v1050
        %v1067 = vsub.f32 %v1003, %v1051
        %v1068 = vsub.f32 %v1004, %v1052
        %v1069 = vsub.f32 %v1005, %v1053
        %v1070 = vsub.f32 %v1006, %v1054
        %v1071 = vsub.f32 %v1007, %v1055
        %v1072 = vsub.f32 %v1008, %v1056
        %v1073 = vsub.f32 %v1009, %v1057
        %v1074 = vmul.f32 %v1058, 1.442695
        %v1075 = vpow.pop %v1074
        %v1076 = vmul.f32 %v1059, 1.442695
        %v1077 = vpow.pop %v1076
        %v1078 = vmul.f32 %v1060, 1.442695
        %v1079 = vpow.pop %v1078
        %v1080 = vmul.f32 %v1061, 1.442695
        %v1081 = vpow.pop %v1080
        %v1082 = vmul.f32 %v1062, 1.442695
        %v1083 = vpow.pop %v1082
        %v1084 = vmul.f32 %v1063, 1.442695
        %v1085 = vpow.pop %v1084
        %v1086 = vmul.f32 %v1064, 1.442695
        %v1087 = vpow.pop %v1086
        %v1088 = vmul.f32 %v1065, 1.442695
        %v1089 = vpow.pop %v1088
        %v1090 = vmul.f32 %v1066, 1.442695
        %v1091 = vpow.pop %v1090
        %v1092 = vmul.f32 %v1067, 1.442695
        %v1093 = vpow.pop %v1092
        %v1094 = vmul.f32 %v1068, 1.442695
        %v1095 = vpow.pop %v1094
        %v1096 = vmul.f32 %v1069, 1.442695
        %v1097 = vpow.pop %v1096
        %v1098 = vmul.f32 %v1070, 1.442695
        %v1099 = vpow.pop %v1098
        %v1100 = vmul.f32 %v1071, 1.442695
        %v1101 = vpow.pop %v1100
        %v1102 = vmul.f32 %v1072, 1.442695
        %v1103 = vpow.pop %v1102
        %v1104 = vmul.f32 %v1073, 1.442695
        %v1105 = vpow.pop %v1104
        %1107 = vset.pattern.permute.xlu0 0
        %1108 = vperm.xlu0 %1107, %v1042
        %v1109 = vpop.permute.xlu0 %1108
        %1112 = vset.pattern.permute.xlu0 0
        %1113 = vperm.xlu0 %1112, %v1043
        %v1114 = vpop.permute.xlu0 %1113
        %1117 = vset.pattern.permute.xlu0 0
        %1118 = vperm.xlu0 %1117, %v1044
        %v1119 = vpop.permute.xlu0 %1118
        %1122 = vset.pattern.permute.xlu0 0
        %1123 = vperm.xlu0 %1122, %v1045
        %v1124 = vpop.permute.xlu0 %1123
        %1127 = vset.pattern.permute.xlu0 0
        %1128 = vperm.xlu0 %1127, %v1046
        %v1129 = vpop.permute.xlu0 %1128
        %1132 = vset.pattern.permute.xlu0 0
        %1133 = vperm.xlu0 %1132, %v1047
        %v1134 = vpop.permute.xlu0 %1133
        %1137 = vset.pattern.permute.xlu0 0
        %1138 = vperm.xlu0 %1137, %v1048
        %v1139 = vpop.permute.xlu0 %1138
        %1142 = vset.pattern.permute.xlu0 0
        %1143 = vperm.xlu0 %1142, %v1049
        %v1144 = vpop.permute.xlu0 %1143
        %1147 = vset.pattern.permute.xlu0 0
        %1148 = vperm.xlu0 %1147, %v1050
        %v1149 = vpop.permute.xlu0 %1148
        %1152 = vset.pattern.permute.xlu0 0
        %1153 = vperm.xlu0 %1152, %v1051
        %v1154 = vpop.permute.xlu0 %1153
        %1157 = vset.pattern.permute.xlu0 0
        %1158 = vperm.xlu0 %1157, %v1052
        %v1159 = vpop.permute.xlu0 %1158
        %1162 = vset.pattern.permute.xlu0 0
        %1163 = vperm.xlu0 %1162, %v1053
        %v1164 = vpop.permute.xlu0 %1163
        %1167 = vset.pattern.permute.xlu0 0
        %1168 = vperm.xlu0 %1167, %v1054
        %v1169 = vpop.permute.xlu0 %1168
        %1172 = vset.pattern.permute.xlu0 0
        %1173 = vperm.xlu0 %1172, %v1055
        %v1174 = vpop.permute.xlu0 %1173
        %1177 = vset.pattern.permute.xlu0 0
        %1178 = vperm.xlu0 %1177, %v1056
        %v1179 = vpop.permute.xlu0 %1178
        %1182 = vset.pattern.permute.xlu0 0
        %1183 = vperm.xlu0 %1182, %v1057
        %v1184 = vpop.permute.xlu0 %1183
        %v1186 = vsub.f32 %v932, %v1109
        %v1187 = vsub.f32 %v935, %v1114
        %v1188 = vsub.f32 %v940, %v1119
        %v1189 = vsub.f32 %v943, %v1124
        %v1190 = vsub.f32 %v948, %v1129
        %v1191 = vsub.f32 %v951, %v1134
        %v1192 = vsub.f32 %v956, %v1139
        %v1193 = vsub.f32 %v959, %v1144
        %v1194 = vsub.f32 %v964, %v1149
        %v1195 = vsub.f32 %v967, %v1154
        %v1196 = vsub.f32 %v972, %v1159
        %v1197 = vsub.f32 %v975, %v1164
        %v1198 = vsub.f32 %v980, %v1169
        %v1199 = vsub.f32 %v983, %v1174
        %v1200 = vsub.f32 %v988, %v1179
        %v1201 = vsub.f32 %v991, %v1184
        %v1202 = vmul.f32 %v1186, 1.442695
        %v1203 = vpow.pop %v1202
        %v1204 = vmul.f32 %v1187, 1.442695
        %v1205 = vpow.pop %v1204
        %v1206 = vmul.f32 %v1188, 1.442695
        %v1207 = vpow.pop %v1206
        %v1208 = vmul.f32 %v1189, 1.442695
        %v1209 = vpow.pop %v1208
        %v1210 = vmul.f32 %v1190, 1.442695
        %v1211 = vpow.pop %v1210
        %v1212 = vmul.f32 %v1191, 1.442695
        %v1213 = vpow.pop %v1212
        %v1214 = vmul.f32 %v1192, 1.442695
        %v1215 = vpow.pop %v1214
        %v1216 = vmul.f32 %v1193, 1.442695
        %v1217 = vpow.pop %v1216
        %v1218 = vmul.f32 %v1194, 1.442695
        %v1219 = vpow.pop %v1218
        %v1220 = vmul.f32 %v1195, 1.442695
        %v1221 = vpow.pop %v1220
        %v1222 = vmul.f32 %v1196, 1.442695
        %v1223 = vpow.pop %v1222
        %v1224 = vmul.f32 %v1197, 1.442695
        %v1225 = vpow.pop %v1224
        %v1226 = vmul.f32 %v1198, 1.442695
        %v1227 = vpow.pop %v1226
        %v1228 = vmul.f32 %v1199, 1.442695
        %v1229 = vpow.pop %v1228
        %v1230 = vmul.f32 %v1200, 1.442695
        %v1231 = vpow.pop %v1230
        %v1232 = vmul.f32 %v1201, 1.442695
        %v1233 = vpow.pop %v1232
        %v1234 = vld [vmem:[#allocation4] sm:$0xff]
        %v1235 = vld [vmem:[#allocation4 + $0x8] sm:$0xff]
        %v1236 = vld [vmem:[#allocation4 + $0x10] sm:$0xff]
        %v1237 = vld [vmem:[#allocation4 + $0x18] sm:$0xff]
        %v1238 = vld [vmem:[#allocation4 + $0x20] sm:$0xff]
        %v1239 = vld [vmem:[#allocation4 + $0x28] sm:$0xff]
        %v1240 = vld [vmem:[#allocation4 + $0x30] sm:$0xff]
        %v1241 = vld [vmem:[#allocation4 + $0x38] sm:$0xff]
        %v1242 = vld [vmem:[#allocation4 + $0x40] sm:$0xff]
        %v1243 = vld [vmem:[#allocation4 + $0x48] sm:$0xff]
        %v1244 = vld [vmem:[#allocation4 + $0x50] sm:$0xff]
        %v1245 = vld [vmem:[#allocation4 + $0x58] sm:$0xff]
        %v1246 = vld [vmem:[#allocation4 + $0x60] sm:$0xff]
        %v1247 = vld [vmem:[#allocation4 + $0x68] sm:$0xff]
        %v1248 = vld [vmem:[#allocation4 + $0x70] sm:$0xff]
        %v1249 = vld [vmem:[#allocation4 + $0x78] sm:$0xff]
        %v1250 = vmul.f32 %v1075, %v1234
        %v1251 = vmul.f32 %v1077, %v1235
        %v1252 = vmul.f32 %v1079, %v1236
        %v1253 = vmul.f32 %v1081, %v1237
        %v1254 = vmul.f32 %v1083, %v1238
        %v1255 = vmul.f32 %v1085, %v1239
        %v1256 = vmul.f32 %v1087, %v1240
        %v1257 = vmul.f32 %v1089, %v1241
        %v1258 = vmul.f32 %v1091, %v1242
        %v1259 = vmul.f32 %v1093, %v1243
        %v1260 = vmul.f32 %v1095, %v1244
        %v1261 = vmul.f32 %v1097, %v1245
        %v1262 = vmul.f32 %v1099, %v1246
        %v1263 = vmul.f32 %v1101, %v1247
        %v1264 = vmul.f32 %v1103, %v1248
        %v1265 = vmul.f32 %v1105, %v1249
        %1266 = vadd.xlane.f32.xlu0 %v1203
        %v1267 = vpop.xlane.xlu0 %1266
        %1268 = vadd.xlane.f32.xlu0 %v1205
        %v1269 = vpop.xlane.xlu0 %1268
        %1270 = vadd.xlane.f32.xlu0 %v1207
        %v1271 = vpop.xlane.xlu0 %1270
        %1272 = vadd.xlane.f32.xlu0 %v1209
        %v1273 = vpop.xlane.xlu0 %1272
        %1274 = vadd.xlane.f32.xlu0 %v1211
        %v1275 = vpop.xlane.xlu0 %1274
        %1276 = vadd.xlane.f32.xlu0 %v1213
        %v1277 = vpop.xlane.xlu0 %1276
        %1278 = vadd.xlane.f32.xlu0 %v1215
        %v1279 = vpop.xlane.xlu0 %1278
        %1280 = vadd.xlane.f32.xlu0 %v1217
        %v1281 = vpop.xlane.xlu0 %1280
        %1282 = vadd.xlane.f32.xlu0 %v1219
        %v1283 = vpop.xlane.xlu0 %1282
        %1284 = vadd.xlane.f32.xlu0 %v1221
        %v1285 = vpop.xlane.xlu0 %1284
        %1286 = vadd.xlane.f32.xlu0 %v1223
        %v1287 = vpop.xlane.xlu0 %1286
        %1288 = vadd.xlane.f32.xlu0 %v1225
        %v1289 = vpop.xlane.xlu0 %1288
        %1290 = vadd.xlane.f32.xlu0 %v1227
        %v1291 = vpop.xlane.xlu0 %1290
        %1292 = vadd.xlane.f32.xlu0 %v1229
        %v1293 = vpop.xlane.xlu0 %1292
        %1294 = vadd.xlane.f32.xlu0 %v1231
        %v1295 = vpop.xlane.xlu0 %1294
        %1296 = vadd.xlane.f32.xlu0 %v1233
        %v1297 = vpop.xlane.xlu0 %1296
        %v1298 = vadd.f32 %v1250, %v1267
        %v1299 = vadd.f32 %v1251, %v1269
        %v1300 = vadd.f32 %v1252, %v1271
        %v1301 = vadd.f32 %v1253, %v1273
        %v1302 = vadd.f32 %v1254, %v1275
        %v1303 = vadd.f32 %v1255, %v1277
        %v1304 = vadd.f32 %v1256, %v1279
        %v1305 = vadd.f32 %v1257, %v1281
        %v1306 = vadd.f32 %v1258, %v1283
        %v1307 = vadd.f32 %v1259, %v1285
        %v1308 = vadd.f32 %v1260, %v1287
        %v1309 = vadd.f32 %v1261, %v1289
        %v1310 = vadd.f32 %v1262, %v1291
        %v1311 = vadd.f32 %v1263, %v1293
        %v1312 = vadd.f32 %v1264, %v1295
        %v1313 = vadd.f32 %v1265, %v1297
        %vm1314 = vcmask 7168
        %1315 = vst.msk [vmem:[#allocation4] sm:$0xff] %vm1314, %v1298
        %1316 = vst.msk [vmem:[#allocation4 + $0x8] sm:$0xff] %vm1314, %v1299
        %1317 = vst.msk [vmem:[#allocation4 + $0x10] sm:$0xff] %vm1314, %v1300
        %1318 = vst.msk [vmem:[#allocation4 + $0x18] sm:$0xff] %vm1314, %v1301
        %1319 = vst.msk [vmem:[#allocation4 + $0x20] sm:$0xff] %vm1314, %v1302
        %1320 = vst.msk [vmem:[#allocation4 + $0x28] sm:$0xff] %vm1314, %v1303
        %1321 = vst.msk [vmem:[#allocation4 + $0x30] sm:$0xff] %vm1314, %v1304
        %1322 = vst.msk [vmem:[#allocation4 + $0x38] sm:$0xff] %vm1314, %v1305
        %1323 = vst.msk [vmem:[#allocation4 + $0x40] sm:$0xff] %vm1314, %v1306
        %1324 = vst.msk [vmem:[#allocation4 + $0x48] sm:$0xff] %vm1314, %v1307
        %1325 = vst.msk [vmem:[#allocation4 + $0x50] sm:$0xff] %vm1314, %v1308
        %1326 = vst.msk [vmem:[#allocation4 + $0x58] sm:$0xff] %vm1314, %v1309
        %1327 = vst.msk [vmem:[#allocation4 + $0x60] sm:$0xff] %vm1314, %v1310
        %1328 = vst.msk [vmem:[#allocation4 + $0x68] sm:$0xff] %vm1314, %v1311
        %1329 = vst.msk [vmem:[#allocation4 + $0x70] sm:$0xff] %vm1314, %v1312
        %1330 = vst.msk [vmem:[#allocation4 + $0x78] sm:$0xff] %vm1314, %v1313
        %v1331 = vpack.c.bf16 %v1205, %v1203
        %v1332 = vpack.c.bf16 %v1209, %v1207
        %v1333 = vpack.c.bf16 %v1213, %v1211
        %v1334 = vpack.c.bf16 %v1217, %v1215
        %v1335 = vpack.c.bf16 %v1221, %v1219
        %v1336 = vpack.c.bf16 %v1225, %v1223
        %v1337 = vpack.c.bf16 %v1229, %v1227
        %v1338 = vpack.c.bf16 %v1233, %v1231
        %v1339 = vpack.c.bf16 %v832, %v829
        %v1340 = vpack.c.bf16 %v840, %v837
        %1341 = vmatprep.subr.bf16.mxu0 0
        %1342 = vmatpush1.bf16.xpose.msra.mxu0 0
        %1343 = vmatprep.subr.bf16.mxu0 0
        %1344 = vmatpush1.bf16.xpose.msra.mxu0 0
        %1345 = vmatprep.subr.bf16.mxu0 0
        %1346 = vmatpush1.bf16.xpose.msra.mxu0 0
        %1347 = vmatprep.subr.bf16.mxu0 0
        %1348 = vmatpush1.bf16.xpose.msra.mxu0 0
        %1349 = vmatprep.subr.bf16.mxu0 0
        %1350 = vmatpush1.bf16.xpose.msra.mxu0 0
        %1351 = vmatprep.subr.bf16.mxu0 0
        %1352 = vmatpush1.bf16.xpose.msra.mxu0 0
        %1353 = vmatprep.subr.bf16.mxu0 0
        %1354 = vmatpush1.bf16.xpose.msra.mxu0 %v1340
        %1355 = vmatprep.subr.bf16.mxu0 0
        %1356 = vmatpush1.bf16.xpose.msra.mxu0 %v1339
        %1357 = vmatprep.subr.bf16.mxu0 0
        %1358 = vmatpush2.bf16.xpose.msra.mxu0 0
        %1359 = vmatprep.subr.bf16.mxu0 0
        %1360 = vmatpush2.bf16.xpose.msra.mxu0 0
        %1361 = vmatprep.subr.bf16.mxu0 0
        %1362 = vmatpush2.bf16.xpose.msra.mxu0 0
        %1363 = vmatprep.subr.bf16.mxu0 0
        %1364 = vmatpush2.bf16.xpose.msra.mxu0 0
        %1365 = vmatprep.subr.bf16.mxu0 0
        %1366 = vmatpush2.bf16.xpose.msra.mxu0 0
        %1367 = vmatprep.subr.bf16.mxu0 0
        %1368 = vmatpush2.bf16.xpose.msra.mxu0 0
        %1369 = vmatprep.subr.bf16.mxu0 0
        %1370 = vmatpush2.bf16.xpose.msra.mxu0 0
        %1371 = vmatprep.subr.bf16.mxu0 0
        %1372 = vmatpush2.bf16.xpose.msra.mxu0 0
        %1373 = vmatprep.mubr.bf16.mxu0 0
        %1374 = vmatmul.mubr.bf16.gmra.mxu0 %v1331
        %v1375 = vpop.f32.mrf.mxu0
        %v1376 = vadd.f32 0.0, %v1375
        %v1377 = vpop.f32.mrf.mxu0
        %v1378 = vpop.f32.mrf.mxu0
        %v1379 = vadd.f32 0.0, %v1378
        %v1380 = vpop.f32.mrf.mxu0
        %1381 = vmatprep.mubr.bf16.mxu0 0
        %1382 = vmatmul.mubr.bf16.gmra.mxu0 %v1332
        %v1383 = vpop.f32.mrf.mxu0
        %v1384 = vadd.f32 0.0, %v1383
        %v1385 = vpop.f32.mrf.mxu0
        %v1386 = vpop.f32.mrf.mxu0
        %v1387 = vadd.f32 0.0, %v1386
        %v1388 = vpop.f32.mrf.mxu0
        %1389 = vmatprep.mubr.bf16.mxu0 0
        %1390 = vmatmul.mubr.bf16.gmra.mxu0 %v1333
        %v1391 = vpop.f32.mrf.mxu0
        %v1392 = vadd.f32 0.0, %v1391
        %v1393 = vpop.f32.mrf.mxu0
        %v1394 = vpop.f32.mrf.mxu0
        %v1395 = vadd.f32 0.0, %v1394
        %v1396 = vpop.f32.mrf.mxu0
        %1397 = vmatprep.mubr.bf16.mxu0 0
        %1398 = vmatmul.mubr.bf16.gmra.mxu0 %v1334
        %v1399 = vpop.f32.mrf.mxu0
        %v1400 = vadd.f32 0.0, %v1399
        %v1401 = vpop.f32.mrf.mxu0
        %v1402 = vpop.f32.mrf.mxu0
        %v1403 = vadd.f32 0.0, %v1402
        %v1404 = vpop.f32.mrf.mxu0
        %1405 = vmatprep.mubr.bf16.mxu0 0
        %1406 = vmatmul.mubr.bf16.gmra.mxu0 %v1335
        %v1407 = vpop.f32.mrf.mxu0
        %v1408 = vadd.f32 0.0, %v1407
        %v1409 = vpop.f32.mrf.mxu0
        %v1410 = vpop.f32.mrf.mxu0
        %v1411 = vadd.f32 0.0, %v1410
        %v1412 = vpop.f32.mrf.mxu0
        %1413 = vmatprep.mubr.bf16.mxu0 0
        %1414 = vmatmul.mubr.bf16.gmra.mxu0 %v1336
        %v1415 = vpop.f32.mrf.mxu0
        %v1416 = vadd.f32 0.0, %v1415
        %v1417 = vpop.f32.mrf.mxu0
        %v1418 = vpop.f32.mrf.mxu0
        %v1419 = vadd.f32 0.0, %v1418
        %v1420 = vpop.f32.mrf.mxu0
        %1421 = vmatprep.mubr.bf16.mxu0 0
        %1422 = vmatmul.mubr.bf16.gmra.mxu0 %v1337
        %v1423 = vpop.f32.mrf.mxu0
        %v1424 = vadd.f32 0.0, %v1423
        %v1425 = vpop.f32.mrf.mxu0
        %v1426 = vpop.f32.mrf.mxu0
        %v1427 = vadd.f32 0.0, %v1426
        %v1428 = vpop.f32.mrf.mxu0
        %1429 = vmatprep.mubr.bf16.mxu0 0
        %1430 = vmatmul.mubr.bf16.gmra.mxu0 %v1338
        %v1431 = vpop.f32.mrf.mxu0
        %v1432 = vadd.f32 0.0, %v1431
        %v1433 = vpop.f32.mrf.mxu0
        %v1434 = vpop.f32.mrf.mxu0
        %v1435 = vadd.f32 0.0, %v1434
        %v1436 = vpop.f32.mrf.mxu0
        %1437 = vdwg.mxu0
        %v1438 = vld [vmem:[#allocation5] sm:$0xff]
        %v1439 = vld [vmem:[#allocation5 + $0x8] sm:$0xff]
        %v1440 = vld [vmem:[#allocation5 + $0x10] sm:$0xff]
        %v1441 = vld [vmem:[#allocation5 + $0x18] sm:$0xff]
        %v1442 = vld [vmem:[#allocation5 + $0x20] sm:$0xff]
        %v1443 = vld [vmem:[#allocation5 + $0x28] sm:$0xff]
        %v1444 = vld [vmem:[#allocation5 + $0x30] sm:$0xff]
        %v1445 = vld [vmem:[#allocation5 + $0x38] sm:$0xff]
        %v1446 = vld [vmem:[#allocation5 + $0x40] sm:$0xff]
        %v1447 = vld [vmem:[#allocation5 + $0x48] sm:$0xff]
        %v1448 = vld [vmem:[#allocation5 + $0x50] sm:$0xff]
        %v1449 = vld [vmem:[#allocation5 + $0x58] sm:$0xff]
        %v1450 = vld [vmem:[#allocation5 + $0x60] sm:$0xff]
        %v1451 = vld [vmem:[#allocation5 + $0x68] sm:$0xff]
        %v1452 = vld [vmem:[#allocation5 + $0x70] sm:$0xff]
        %v1453 = vld [vmem:[#allocation5 + $0x78] sm:$0xff]
        %1455 = vset.pattern.permute.xlu0 0
        %1456 = vperm.xlu0 %1455, %v1075
        %v1457 = vpop.permute.xlu0 %1456
        %1460 = vset.pattern.permute.xlu0 0
        %1461 = vperm.xlu0 %1460, %v1077
        %v1462 = vpop.permute.xlu0 %1461
        %1465 = vset.pattern.permute.xlu0 0
        %1466 = vperm.xlu0 %1465, %v1079
        %v1467 = vpop.permute.xlu0 %1466
        %1470 = vset.pattern.permute.xlu0 0
        %1471 = vperm.xlu0 %1470, %v1081
        %v1472 = vpop.permute.xlu0 %1471
        %1475 = vset.pattern.permute.xlu0 0
        %1476 = vperm.xlu0 %1475, %v1083
        %v1477 = vpop.permute.xlu0 %1476
        %1480 = vset.pattern.permute.xlu0 0
        %1481 = vperm.xlu0 %1480, %v1085
        %v1482 = vpop.permute.xlu0 %1481
        %1485 = vset.pattern.permute.xlu0 0
        %1486 = vperm.xlu0 %1485, %v1087
        %v1487 = vpop.permute.xlu0 %1486
        %1490 = vset.pattern.permute.xlu0 0
        %1491 = vperm.xlu0 %1490, %v1089
        %v1492 = vpop.permute.xlu0 %1491
        %1495 = vset.pattern.permute.xlu0 0
        %1496 = vperm.xlu0 %1495, %v1091
        %v1497 = vpop.permute.xlu0 %1496
        %1500 = vset.pattern.permute.xlu0 0
        %1501 = vperm.xlu0 %1500, %v1093
        %v1502 = vpop.permute.xlu0 %1501
        %1505 = vset.pattern.permute.xlu0 0
        %1506 = vperm.xlu0 %1505, %v1095
        %v1507 = vpop.permute.xlu0 %1506
        %1510 = vset.pattern.permute.xlu0 0
        %1511 = vperm.xlu0 %1510, %v1097
        %v1512 = vpop.permute.xlu0 %1511
        %1515 = vset.pattern.permute.xlu0 0
        %1516 = vperm.xlu0 %1515, %v1099
        %v1517 = vpop.permute.xlu0 %1516
        %1520 = vset.pattern.permute.xlu0 0
        %1521 = vperm.xlu0 %1520, %v1101
        %v1522 = vpop.permute.xlu0 %1521
        %1525 = vset.pattern.permute.xlu0 0
        %1526 = vperm.xlu0 %1525, %v1103
        %v1527 = vpop.permute.xlu0 %1526
        %1530 = vset.pattern.permute.xlu0 0
        %1531 = vperm.xlu0 %1530, %v1105
        %v1532 = vpop.permute.xlu0 %1531
        %v1534 = vmul.f32 %v1457, %v1438
        %v1535 = vmul.f32 %v1462, %v1439
        %v1536 = vmul.f32 %v1467, %v1440
        %v1537 = vmul.f32 %v1472, %v1441
        %v1538 = vmul.f32 %v1477, %v1442
        %v1539 = vmul.f32 %v1482, %v1443
        %v1540 = vmul.f32 %v1487, %v1444
        %v1541 = vmul.f32 %v1492, %v1445
        %v1542 = vmul.f32 %v1497, %v1446
        %v1543 = vmul.f32 %v1502, %v1447
        %v1544 = vmul.f32 %v1507, %v1448
        %v1545 = vmul.f32 %v1512, %v1449
        %v1546 = vmul.f32 %v1517, %v1450
        %v1547 = vmul.f32 %v1522, %v1451
        %v1548 = vmul.f32 %v1527, %v1452
        %v1549 = vmul.f32 %v1532, %v1453
        %v1550 = vadd.f32 %v1534, %v1376
        %v1551 = vadd.f32 %v1535, %v1379
        %v1552 = vadd.f32 %v1536, %v1384
        %v1553 = vadd.f32 %v1537, %v1387
        %v1554 = vadd.f32 %v1538, %v1392
        %v1555 = vadd.f32 %v1539, %v1395
        %v1556 = vadd.f32 %v1540, %v1400
        %v1557 = vadd.f32 %v1541, %v1403
        %v1558 = vadd.f32 %v1542, %v1408
        %v1559 = vadd.f32 %v1543, %v1411
        %v1560 = vadd.f32 %v1544, %v1416
        %v1561 = vadd.f32 %v1545, %v1419
        %v1562 = vadd.f32 %v1546, %v1424
        %v1563 = vadd.f32 %v1547, %v1427
        %v1564 = vadd.f32 %v1548, %v1432
        %v1565 = vadd.f32 %v1549, %v1435
        %1566 = vst.msk [vmem:[#allocation5] sm:$0xff] %vm706, %v1550
        %1567 = vst.msk [vmem:[#allocation5 + $0x8] sm:$0xff] %vm706, %v1551
        %1568 = vst.msk [vmem:[#allocation5 + $0x10] sm:$0xff] %vm706, %v1552
        %1569 = vst.msk [vmem:[#allocation5 + $0x18] sm:$0xff] %vm706, %v1553
        %1570 = vst.msk [vmem:[#allocation5 + $0x20] sm:$0xff] %vm706, %v1554
        %1571 = vst.msk [vmem:[#allocation5 + $0x28] sm:$0xff] %vm706, %v1555
        %1572 = vst.msk [vmem:[#allocation5 + $0x30] sm:$0xff] %vm706, %v1556
        %1573 = vst.msk [vmem:[#allocation5 + $0x38] sm:$0xff] %vm706, %v1557
        %1574 = vst.msk [vmem:[#allocation5 + $0x40] sm:$0xff] %vm706, %v1558
        %1575 = vst.msk [vmem:[#allocation5 + $0x48] sm:$0xff] %vm706, %v1559
        %1576 = vst.msk [vmem:[#allocation5 + $0x50] sm:$0xff] %vm706, %v1560
        %1577 = vst.msk [vmem:[#allocation5 + $0x58] sm:$0xff] %vm706, %v1561
        %1578 = vst.msk [vmem:[#allocation5 + $0x60] sm:$0xff] %vm706, %v1562
        %1579 = vst.msk [vmem:[#allocation5 + $0x68] sm:$0xff] %vm706, %v1563
        %1580 = vst.msk [vmem:[#allocation5 + $0x70] sm:$0xff] %vm706, %v1564
        %1581 = vst.msk [vmem:[#allocation5 + $0x78] sm:$0xff] %vm706, %v1565
        %1582 = vst.msk [vmem:[#allocation3] sm:$0xff] %vm1314, %v1042
        %1583 = vst.msk [vmem:[#allocation3 + $0x8] sm:$0xff] %vm1314, %v1043
        %1584 = vst.msk [vmem:[#allocation3 + $0x10] sm:$0xff] %vm1314, %v1044
        %1585 = vst.msk [vmem:[#allocation3 + $0x18] sm:$0xff] %vm1314, %v1045
        %1586 = vst.msk [vmem:[#allocation3 + $0x20] sm:$0xff] %vm1314, %v1046
        %1587 = vst.msk [vmem:[#allocation3 + $0x28] sm:$0xff] %vm1314, %v1047
        %1588 = vst.msk [vmem:[#allocation3 + $0x30] sm:$0xff] %vm1314, %v1048
        %1589 = vst.msk [vmem:[#allocation3 + $0x38] sm:$0xff] %vm1314, %v1049
        %1590 = vst.msk [vmem:[#allocation3 + $0x40] sm:$0xff] %vm1314, %v1050
        %1591 = vst.msk [vmem:[#allocation3 + $0x48] sm:$0xff] %vm1314, %v1051
        %1592 = vst.msk [vmem:[#allocation3 + $0x50] sm:$0xff] %vm1314, %v1052
        %1593 = vst.msk [vmem:[#allocation3 + $0x58] sm:$0xff] %vm1314, %v1053
        %1594 = vst.msk [vmem:[#allocation3 + $0x60] sm:$0xff] %vm1314, %v1054
        %1595 = vst.msk [vmem:[#allocation3 + $0x68] sm:$0xff] %vm1314, %v1055
        %1596 = vst.msk [vmem:[#allocation3 + $0x70] sm:$0xff] %vm1314, %v1056
        %1597 = vst.msk [vmem:[#allocation3 + $0x78] sm:$0xff] %vm1314, %v1057
        %p1598 = scmp.eq.s32.totalorder %s37, 1
        // Predicated region
        $region69: #{tpu_custom_call.1} parent=55 // pred_check
          %p1599 = pneg %p1598
        $region70: #{tpu_custom_call.1} parent=55 // pred_check_branch
          %1601 = sbr.rel (%p1599) target = $region72
        $region71: #{tpu_custom_call.1} parent=55 // pred_region
          %v1602 = vld [vmem:[#allocation4] sm:$0xff]
          %v1603 = vld [vmem:[#allocation4 + $0x8] sm:$0xff]
          %v1604 = vld [vmem:[#allocation4 + $0x10] sm:$0xff]
          %v1605 = vld [vmem:[#allocation4 + $0x18] sm:$0xff]
          %v1606 = vld [vmem:[#allocation4 + $0x20] sm:$0xff]
          %v1607 = vld [vmem:[#allocation4 + $0x28] sm:$0xff]
          %v1608 = vld [vmem:[#allocation4 + $0x30] sm:$0xff]
          %v1609 = vld [vmem:[#allocation4 + $0x38] sm:$0xff]
          %v1610 = vld [vmem:[#allocation4 + $0x40] sm:$0xff]
          %v1611 = vld [vmem:[#allocation4 + $0x48] sm:$0xff]
          %v1612 = vld [vmem:[#allocation4 + $0x50] sm:$0xff]
          %v1613 = vld [vmem:[#allocation4 + $0x58] sm:$0xff]
          %v1614 = vld [vmem:[#allocation4 + $0x60] sm:$0xff]
          %v1615 = vld [vmem:[#allocation4 + $0x68] sm:$0xff]
          %v1616 = vld [vmem:[#allocation4 + $0x70] sm:$0xff]
          %v1617 = vld [vmem:[#allocation4 + $0x78] sm:$0xff]
          %v1618 = vrcp.pop %v1602
          %v1619 = vrcp.pop %v1603
          %v1620 = vrcp.pop %v1604
          %v1621 = vrcp.pop %v1605
          %v1622 = vrcp.pop %v1606
          %v1623 = vrcp.pop %v1607
          %v1624 = vrcp.pop %v1608
          %v1625 = vrcp.pop %v1609
          %v1626 = vrcp.pop %v1610
          %v1627 = vrcp.pop %v1611
          %v1628 = vrcp.pop %v1612
          %v1629 = vrcp.pop %v1613
          %v1630 = vrcp.pop %v1614
          %v1631 = vrcp.pop %v1615
          %v1632 = vrcp.pop %v1616
          %v1633 = vrcp.pop %v1617
          %v1634 = vld [vmem:[#allocation5] sm:$0xff]
          %v1635 = vld [vmem:[#allocation5 + $0x8] sm:$0xff]
          %v1636 = vld [vmem:[#allocation5 + $0x10] sm:$0xff]
          %v1637 = vld [vmem:[#allocation5 + $0x18] sm:$0xff]
          %v1638 = vld [vmem:[#allocation5 + $0x20] sm:$0xff]
          %v1639 = vld [vmem:[#allocation5 + $0x28] sm:$0xff]
          %v1640 = vld [vmem:[#allocation5 + $0x30] sm:$0xff]
          %v1641 = vld [vmem:[#allocation5 + $0x38] sm:$0xff]
          %v1642 = vld [vmem:[#allocation5 + $0x40] sm:$0xff]
          %v1643 = vld [vmem:[#allocation5 + $0x48] sm:$0xff]
          %v1644 = vld [vmem:[#allocation5 + $0x50] sm:$0xff]
          %v1645 = vld [vmem:[#allocation5 + $0x58] sm:$0xff]
          %v1646 = vld [vmem:[#allocation5 + $0x60] sm:$0xff]
          %v1647 = vld [vmem:[#allocation5 + $0x68] sm:$0xff]
          %v1648 = vld [vmem:[#allocation5 + $0x70] sm:$0xff]
          %v1649 = vld [vmem:[#allocation5 + $0x78] sm:$0xff]
          %1651 = vset.pattern.permute.xlu0 0
          %1652 = vperm.xlu0 %1651, %v1618
          %v1653 = vpop.permute.xlu0 %1652
          %1656 = vset.pattern.permute.xlu0 0
          %1657 = vperm.xlu0 %1656, %v1619
          %v1658 = vpop.permute.xlu0 %1657
          %1661 = vset.pattern.permute.xlu0 0
          %1662 = vperm.xlu0 %1661, %v1620
          %v1663 = vpop.permute.xlu0 %1662
          %1666 = vset.pattern.permute.xlu0 0
          %1667 = vperm.xlu0 %1666, %v1621
          %v1668 = vpop.permute.xlu0 %1667
          %1671 = vset.pattern.permute.xlu0 0
          %1672 = vperm.xlu0 %1671, %v1622
          %v1673 = vpop.permute.xlu0 %1672
          %1676 = vset.pattern.permute.xlu0 0
          %1677 = vperm.xlu0 %1676, %v1623
          %v1678 = vpop.permute.xlu0 %1677
          %1681 = vset.pattern.permute.xlu0 0
          %1682 = vperm.xlu0 %1681, %v1624
          %v1683 = vpop.permute.xlu0 %1682
          %1686 = vset.pattern.permute.xlu0 0
          %1687 = vperm.xlu0 %1686, %v1625
          %v1688 = vpop.permute.xlu0 %1687
          %1691 = vset.pattern.permute.xlu0 0
          %1692 = vperm.xlu0 %1691, %v1626
          %v1693 = vpop.permute.xlu0 %1692
          %1696 = vset.pattern.permute.xlu0 0
          %1697 = vperm.xlu0 %1696, %v1627
          %v1698 = vpop.permute.xlu0 %1697
          %1701 = vset.pattern.permute.xlu0 0
          %1702 = vperm.xlu0 %1701, %v1628
          %v1703 = vpop.permute.xlu0 %1702
          %1706 = vset.pattern.permute.xlu0 0
          %1707 = vperm.xlu0 %1706, %v1629
          %v1708 = vpop.permute.xlu0 %1707
          %1711 = vset.pattern.permute.xlu0 0
          %1712 = vperm.xlu0 %1711, %v1630
          %v1713 = vpop.permute.xlu0 %1712
          %1716 = vset.pattern.permute.xlu0 0
          %1717 = vperm.xlu0 %1716, %v1631
          %v1718 = vpop.permute.xlu0 %1717
          %1721 = vset.pattern.permute.xlu0 0
          %1722 = vperm.xlu0 %1721, %v1632
          %v1723 = vpop.permute.xlu0 %1722
          %1726 = vset.pattern.permute.xlu0 0
          %1727 = vperm.xlu0 %1726, %v1633
          %v1728 = vpop.permute.xlu0 %1727
          %v1730 = vmul.f32 %v1634, %v1653
          %v1731 = vmul.f32 %v1635, %v1658
          %v1732 = vmul.f32 %v1636, %v1663
          %v1733 = vmul.f32 %v1637, %v1668
          %v1734 = vmul.f32 %v1638, %v1673
          %v1735 = vmul.f32 %v1639, %v1678
          %v1736 = vmul.f32 %v1640, %v1683
          %v1737 = vmul.f32 %v1641, %v1688
          %v1738 = vmul.f32 %v1642, %v1693
          %v1739 = vmul.f32 %v1643, %v1698
          %v1740 = vmul.f32 %v1644, %v1703
          %v1741 = vmul.f32 %v1645, %v1708
          %v1742 = vmul.f32 %v1646, %v1713
          %v1743 = vmul.f32 %v1647, %v1718
          %v1744 = vmul.f32 %v1648, %v1723
          %v1745 = vmul.f32 %v1649, %v1728
          %1746 = vxpose.xlu0.b32.start [1/16] %v1730, 128
          %1747 = vxpose.xlu0.b32.cont [2/16] %v1731, 128
          %1748 = vxpose.xlu0.b32.cont [3/16] %v1732, 128
          %1749 = vxpose.xlu0.b32.cont [4/16] %v1733, 128
          %1750 = vxpose.xlu0.b32.cont [5/16] %v1734, 128
          %1751 = vxpose.xlu0.b32.cont [6/16] %v1735, 128
          %1752 = vxpose.xlu0.b32.cont [7/16] %v1736, 128
          %1753 = vxpose.xlu0.b32.cont [8/16] %v1737, 128
          %1754 = vxpose.xlu0.b32.cont [9/16] %v1738, 128
          %1755 = vxpose.xlu0.b32.cont [10/16] %v1739, 128
          %1756 = vxpose.xlu0.b32.cont [11/16] %v1740, 128
          %1757 = vxpose.xlu0.b32.cont [12/16] %v1741, 128
          %1758 = vxpose.xlu0.b32.cont [13/16] %v1742, 128
          %1759 = vxpose.xlu0.b32.cont [14/16] %v1743, 128
          %1760 = vxpose.xlu0.b32.cont [15/16] %v1744, 128
          %1761 = vxpose.xlu0.b32.end [16/16] %v1745, 128
          %v1762 = vpop.trf.xlu0
          %v1763 = vpop.trf.xlu0
          %v1764 = vpop.trf.xlu0
          %v1765 = vpop.trf.xlu0
          %v1766 = vpop.trf.xlu0
          %v1767 = vpop.trf.xlu0
          %v1768 = vpop.trf.xlu0
          %v1769 = vpop.trf.xlu0
          %v1770 = vpop.trf.xlu0
          %v1771 = vpop.trf.xlu0
          %v1772 = vpop.trf.xlu0
          %v1773 = vpop.trf.xlu0
          %v1774 = vpop.trf.xlu0
          %v1775 = vpop.trf.xlu0
          %v1776 = vpop.trf.xlu0
          %v1777 = vpop.trf.xlu0
          %s1778 = sld [smem:[#allocation6]]
          %v1779 = vstv %s1778
          %v1780 = vmul.f32 %v1779, %v1762
          %v1781 = vmul.f32 %v1779, %v1763
          %v1782 = vmul.f32 %v1779, %v1764
          %v1783 = vmul.f32 %v1779, %v1765
          %v1784 = vld [vmem:[%s370] sm:$0xf]
          %v1785 = vld [vmem:[%s370 + $0x4] sm:$0xf]
          %v1786 = vld [vmem:[%s370 + $0x8] sm:$0xf]
          %v1787 = vld [vmem:[%s370 + $0xc] sm:$0xf]
          %v1788 = vunpack.c.l.bf16 %v1784
          %v1789 = vunpack.c.l.bf16 %v1785
          %v1790 = vunpack.c.l.bf16 %v1786
          %v1791 = vunpack.c.l.bf16 %v1787
          %v1792 = vadd.f32 %v1780, %v1788
          %v1793 = vadd.f32 %v1781, %v1789
          %v1794 = vadd.f32 %v1782, %v1790
          %v1795 = vadd.f32 %v1783, %v1791
          %1796 = vst [vmem:[%s418] sm:$0xff] %v1792
          %1797 = vst [vmem:[%s418 + $0x8] sm:$0xff] %v1793
          %1798 = vst [vmem:[%s418 + $0x10] sm:$0xff] %v1794
          %1799 = vst [vmem:[%s418 + $0x18] sm:$0xff] %v1795
        $region72: #{tpu_custom_call.1} parent=55 // pred_fallthru
          _
        %s1800 = sand.u32 %s262, 1
        %s1801 = scalar_lea.sflag [#allocation9], %s1800
        %s1802 = sand.u32 %s262, 1
        %s1803 = smul.addr %s1802, 32
        %s1804 = scalar_lea.vmem [#allocation12], %s1803
        // Predicated region
        $region73: #{tpu_custom_call.1} parent=55 // pred_check
          %p1805 = pneg %p272
        $region74: #{tpu_custom_call.1} parent=55 // pred_check_branch
          %1807 = sbr.rel (%p1805) target = $region76
        $region75: #{tpu_custom_call.1} parent=55 // pred_region
          %s1809 = ssub.s32 512, 512
          %1810 = vsyncadd %s1801, %s1809
          %s1811 = smul.addr %s35, 8
          %s1812 = sadd.s32 %s36, %s1811
          %s1813 = smul.addr %s1812, 128
          %s1814 = scalar_lea.hbm %s9, %s1813
          %s1815 = sshll.u32 %s1804, 4
          %s1816 = int_to_ptr.vmem [resolvable:$true] %s1815
          %1821 = dma.vmem_to_hbm [thread:$0]  %s1816, 512, %s1814, %s1801, 128, 256, 8
        $region76: #{tpu_custom_call.1} parent=55 // pred_fallthru
          _
      $region56: #{tpu_custom_call.1} parent=5 // pred_fallthru
        _
      %p1822 = scmp.le.s32.totalorder 2, %s25
      // Predicated region
      $region77: #{tpu_custom_call.1} parent=5 // pred_check
        %p1823 = pneg %p1822
      $region78: #{tpu_custom_call.1} parent=5 // pred_check_branch
        %1825 = sbr.rel (%p1823) target = $region80
      $region79: #{tpu_custom_call.1} parent=5 // pred_region
        %s1826 = ssub.s32 %s25, 2
        // Predicated region
        $region81: #{tpu_custom_call.1} parent=79 // pred_check
          %p1827 = pneg %p278
        $region82: #{tpu_custom_call.1} parent=79 // pred_check_branch
          %1829 = sbr.rel (%p1827) target = $region84
        $region83: #{tpu_custom_call.1} parent=79 // pred_region
          %s1830 = sand.u32 %s263, 1
          %s1831 = scalar_lea.sflag [#allocation9], %s1830
          %s1832 = sand.u32 %s263, 1
          %s1833 = smul.addr %s1832, 32
          %s1834 = scalar_lea.vmem [#allocation12], %s1833
          %1835 = dma.done %s1831, 512
        $region84: #{tpu_custom_call.1} parent=79 // pred_fallthru
          _
      $region80: #{tpu_custom_call.1} parent=5 // pred_fallthru
        _
    $region6: #{tpu_custom_call.1} parent=1 // loop_footer
      %s29 = sadd.s32 1, %s25
    $region7: #{tpu_custom_call.1} parent=1 // loop_footer_branch
      %24 = sbr.rel target = $region3
    $region8: #{tpu_custom_call.1} parent=1 // loop_exit
      _
    %1836 = vsyncpa [#allocation8], 1
    %s1837 = scalar_lea.sflag [#allocation8], 1
    %1838 = vsyncpa %s1837, 1
    %1839 = vsyncpa [#allocation11], 1
    %s1840 = scalar_lea.sflag [#allocation11], 1
    %1841 = vsyncpa %s1840, 1
    %1842 = vsyncpa [#allocation9], 1
    %s1843 = scalar_lea.sflag [#allocation9], 1
    %1844 = vsyncpa %s1843, 1

</llo_original>
